<compile_context>
chip_gen: v5e
topology: v5e:2x2
jax: 0.10.0
libtpu: 0.0.40
codegen_flags: <defaults>
</compile_context>

<pallas_src>
import jax
import jax.numpy as jnp
from jax import lax
from jax.experimental import pallas as pl
from jax.experimental.pallas import tpu as pltpu


# ---------------------------------------------------------------------------
# Fused kernel: masked token-logprob sums for all four logits streams.
#
# grid = (seq_tiles, vocab_tiles).  Labels blocks depend only on the seq index,
# so they are DMA'd once per seq tile and reused across the vocab sweep and
# across the policy/reference streams.
#
# Per (stream, b, t) online-LSE state in VMEM scratch:
#   m = running max over vocab tiles
#   l = running sum(exp(x - m))
#   g = running label logit (picked up from the single vocab tile containing
#       the label column; -100 labels never hit -> contribute 0)
# At the last vocab tile: log_softmax(y) = g - (m + log l); mask, reduce over
# the seq tile, accumulate into the (B, 1) resident output refs.
# ---------------------------------------------------------------------------
def _dpo_logprob_kernel(
    pos_lab_ref, neg_lab_ref,                                  # (B, TS) int32
    ppos_ref, pneg_ref, rpos_ref, rneg_ref,                    # (B, TS, TV) logits tiles
    ppos_sum_ref, pneg_sum_ref, rpos_sum_ref, rneg_sum_ref,    # (B, 1) f32
    pos_cnt_ref, neg_cnt_ref,                                  # (B, 1) f32
    m_scr, l_scr, g_scr,                                       # (4, B, TS) f32 scratch
):
    s = pl.program_id(0)
    v = pl.program_id(1)
    nv = pl.num_programs(1)

    @pl.when((s == 0) & (v == 0))
    def _init_outputs():
        for ref in (ppos_sum_ref, pneg_sum_ref, rpos_sum_ref, rneg_sum_ref,
                    pos_cnt_ref, neg_cnt_ref):
            ref[...] = jnp.zeros_like(ref)

    @pl.when(v == 0)
    def _init_online_lse():
        m_scr[...] = jnp.full_like(m_scr, -jnp.inf)
        l_scr[...] = jnp.zeros_like(l_scr)
        g_scr[...] = jnp.zeros_like(g_scr)

    B, TS, TV = ppos_ref.shape
    v_start = v * TV

    # Label-dependent work computed once and shared by policy & reference.
    label_hits = []    # (B, TS, TV) bool: this vocab tile holds the label column
    label_masks = []   # (B, TS) f32: 1.0 where label != -100
    for lab_ref in (pos_lab_ref, neg_lab_ref):
        labels = lab_ref[...]                                   # (B, TS) int32
        local = labels - v_start                                # column within this tile
        col = lax.broadcasted_iota(jnp.int32, (B, TS, TV), 2)
        label_hits.append(col == local[:, :, None])             # all-False for -100
        label_masks.append((labels != -100).astype(jnp.float32))

    streams = (
        (ppos_ref, ppos_sum_ref, 0),
        (pneg_ref, pneg_sum_ref, 1),
        (rpos_ref, rpos_sum_ref, 0),
        (rneg_ref, rneg_sum_ref, 1),
    )

    # Online logsumexp update + label-logit gather (select+reduce, no one-hot
    # f32 tensor, no materialized log-softmax).
    for k, (logit_ref, _, li) in enumerate(streams):
        chunk = logit_ref[...].astype(jnp.float32)              # (B, TS, TV)
        m_prev = m_scr[k]
        m_new = jnp.maximum(m_prev, jnp.max(chunk, axis=-1))    # (B, TS)
        alpha = jnp.exp(m_prev - m_new)                         # 0.0 on first vocab tile
        l_scr[k] = l_scr[k] * alpha + jnp.sum(
            jnp.exp(chunk - m_new[:, :, None]), axis=-1)
        g_scr[k] = g_scr[k] + jnp.sum(
            jnp.where(label_hits[li], chunk, 0.0), axis=-1)
        m_scr[k] = m_new

    @pl.when(v == nv - 1)
    def _finalize_seq_tile():
        for k, (_, out_ref, li) in enumerate(streams):
            lse = m_scr[k] + jnp.log(l_scr[k])                  # (B, TS)
            tok_logp = g_scr[k] - lse
            out_ref[...] += jnp.sum(tok_logp * label_masks[li], axis=-1, keepdims=True)
        pos_cnt_ref[...] += jnp.sum(label_masks[0], axis=-1, keepdims=True)
        neg_cnt_ref[...] += jnp.sum(label_masks[1], axis=-1, keepdims=True)


# ---------------------------------------------------------------------------
# Tiling helpers + wrapper
# ---------------------------------------------------------------------------
# Budget for the 4 streams x 2 pipeline buffers of logits tiles (conservative
# across v5e/v6e/v7x default scoped-VMEM limits; raise together with
# vmem_limit_bytes for bigger tiles — keep total <= ~48 MiB on v7x).
_LOGITS_TILE_BUDGET_BYTES = 24 << 20


def _auto_tile(dim, max_tile):
    """Largest tile <= max_tile dividing `dim` that is the full dim or a
    multiple of 128 (TPU lane/sublane block constraint). Falls back to full."""
    if dim <= max_tile:
        return dim
    t = (max_tile // 128) * 128
    while t >= 128:
        if dim % t == 0:
            return t
        t -= 128
    return dim


def dpo_masked_logprob_sums(policy_pos_logits, policy_neg_logits,
                            reference_pos_logits, reference_neg_logits,
                            pos_labels, neg_labels, *,
                            seq_tile=None, vocab_tile=None,
                            vmem_limit_bytes=None):
    """Single fused launch. Returns 6 arrays of shape (B,):
    (policy_pos_sum, policy_neg_sum, reference_pos_sum, reference_neg_sum,
     pos_mask_count, neg_mask_count)."""
    B, S, V = policy_pos_logits.shape
    for t in (policy_neg_logits, reference_pos_logits, reference_neg_logits):
        assert t.shape == (B, S, V)
    assert pos_labels.shape == (B, S) and neg_labels.shape == (B, S)

    itemsize = jnp.dtype(policy_pos_logits.dtype).itemsize
    if seq_tile is None:
        seq_tile = _auto_tile(S, 256)
    if vocab_tile is None:
        per_block = _LOGITS_TILE_BUDGET_BYTES // 8          # 4 streams x 2 buffers
        max_vocab = max(128, per_block // max(1, B * seq_tile * itemsize))
        vocab_tile = _auto_tile(V, max_vocab)

    # (8,128)-divisibility / full-extent constraints on the blocks.
    assert S % seq_tile == 0 and (seq_tile == S or seq_tile % 128 == 0)
    assert V % vocab_tile == 0 and (vocab_tile == V or vocab_tile % 128 == 0)

    pos_labels = pos_labels.astype(jnp.int32)
    neg_labels = neg_labels.astype(jnp.int32)

    grid = (S // seq_tile, V // vocab_tile)

    def logits_spec():
        return pl.BlockSpec((B, seq_tile, vocab_tile), lambda s, v: (0, s, v))

    def labels_spec():
        return pl.BlockSpec((B, seq_tile), lambda s, v: (0, s))

    def out_spec():
        return pl.BlockSpec((B, 1), lambda s, v: (0, 0))

    out_struct = jax.ShapeDtypeStruct((B, 1), jnp.float32)

    compiler_params = pltpu.CompilerParams(
        # Resident accumulator outputs across both axes -> "arbitrary".
        dimension_semantics=("arbitrary", "arbitrary"),
        # v5e default scoped VMEM is 16 MiB, v6e/v7x 32 MiB — raise for big tiles.
        vmem_limit_bytes=vmem_limit_bytes,
    )

    outs = pl.pallas_call(
        _dpo_logprob_kernel,
        out_shape=tuple(out_struct for _ in range(6)),
        grid_spec=pltpu.PrefetchScalarGridSpec(
            num_scalar_prefetch=0,
            grid=grid,
            in_specs=[labels_spec(), labels_spec(),
                      logits_spec(), logits_spec(), logits_spec(), logits_spec()],
            out_specs=[out_spec() for _ in range(6)],
            scratch_shapes=[
                pltpu.VMEM((4, B, seq_tile), jnp.float32),   # running max
                pltpu.VMEM((4, B, seq_tile), jnp.float32),   # running exp-sum
                pltpu.VMEM((4, B, seq_tile), jnp.float32),   # gathered label logit
            ],
        ),
        compiler_params=compiler_params,
    )(pos_labels, neg_labels,
      policy_pos_logits, policy_neg_logits,
      reference_pos_logits, reference_neg_logits)

    return tuple(o[:, 0] for o in outs)


# ---------------------------------------------------------------------------
# DPOLoss module equivalent
# ---------------------------------------------------------------------------
class DPOLoss:
    def __init__(self, beta=0.1, label_smoothing=0.0, average_logprobs=False):
        self.beta = float(beta)
        self.label_smoothing = float(label_smoothing)
        self.average_logprobs = bool(average_logprobs)

    def __call__(self, *, policy_pos_logits, policy_neg_logits,
                 reference_pos_logits, reference_neg_logits,
                 pos_labels, neg_labels):
        (ppos_sum, pneg_sum, rpos_sum, rneg_sum,
         pos_cnt, neg_cnt) = dpo_masked_logprob_sums(
            policy_pos_logits, policy_neg_logits,
            reference_pos_logits, reference_neg_logits,
            pos_labels, neg_labels)

        if self.average_logprobs:
            # Matches the PyTorch spec exactly (no guard for fully-masked rows).
            policy_pos_logp = ppos_sum / pos_cnt
            policy_neg_logp = pneg_sum / neg_cnt
            reference_pos_logp = rpos_sum / pos_cnt
            reference_neg_logp = rneg_sum / neg_cnt
        else:
            policy_pos_logp = ppos_sum
            policy_neg_logp = pneg_sum
            reference_pos_logp = rpos_sum
            reference_neg_logp = rneg_sum

        # Tiny elementwise epilogue on (B,) vectors: plain jnp (XLA fuses it).
        pi_logratios = policy_pos_logp - policy_neg_logp
        ref_logratios = reference_pos_logp - reference_neg_logp
        logits = pi_logratios - ref_logratios
        losses = (-jax.nn.log_sigmoid(self.beta * logits) * (1.0 - self.label_smoothing)
                  - jax.nn.log_sigmoid(-self.beta * logits) * self.label_smoothing)

        pos_rewards = lax.stop_gradient(self.beta * (policy_pos_logp - reference_pos_logp))
        neg_rewards = lax.stop_gradient(self.beta * (policy_neg_logp - reference_neg_logp))
        reward_margins = pos_rewards - neg_rewards
        reward_accuracy = (pos_rewards > neg_rewards).astype(jnp.float32)

        metrics = {
            "dpo/chosen": pos_rewards.mean(),
            "dpo/rejected": neg_rewards.mean(),
            "dpo/accuracy": reward_accuracy.mean(),
            "dpo/margin": reward_margins.mean(),
        }
        return losses.mean(), metrics


# ---------------------------------------------------------------------------
# Plain-JAX reference (for verification)
# ---------------------------------------------------------------------------
def _ref_logprobs(logits, labels, average):
    logp = jax.nn.log_softmax(logits.astype(jnp.float32), axis=-1)
    safe = jnp.where(labels == -100, 0, labels)
    tok = jnp.take_along_axis(logp, safe[..., None], axis=-1)[..., 0]
    mask = (labels != -100).astype(jnp.float32)
    masked = tok * mask
    return masked.sum(-1) / mask.sum(-1) if average else masked.sum(-1)


def _ref_dpo(beta, label_smoothing, average, **kw):
    ppos = _ref_logprobs(kw["policy_pos_logits"], kw["pos_labels"], average)
    pneg = _ref_logprobs(kw["policy_neg_logits"], kw["neg_labels"], average)
    rpos = _ref_logprobs(kw["reference_pos_logits"], kw["pos_labels"], average)
    rneg = _ref_logprobs(kw["reference_neg_logits"], kw["neg_labels"], average)
    logits = (ppos - pneg) - (rpos - rneg)
    losses = (-jax.nn.log_sigmoid(beta * logits) * (1.0 - label_smoothing)
              - jax.nn.log_sigmoid(-beta * logits) * label_smoothing)
    return losses.mean()


if __name__ == "__main__":
    # --- primary demo: small shapes consistent with the module ---
    B, S, V = 2, 8, 32
    key = jax.random.PRNGKey(0)
    k1, k2, k3, k4, k5, k6 = jax.random.split(key, 6)

    policy_pos_logits = jax.random.normal(k1, (B, S, V), jnp.float32)
    policy_neg_logits = jax.random.normal(k2, (B, S, V), jnp.float32)
    reference_pos_logits = jax.random.normal(k3, (B, S, V), jnp.float32)
    reference_neg_logits = jax.random.normal(k4, (B, S, V), jnp.float32)
    pos_labels = jax.random.randint(k5, (B, S), 0, V, jnp.int32).at[:, :2].set(-100)
    neg_labels = jax.random.randint(k6, (B, S), 0, V, jnp.int32).at[:, :1].set(-100)

    kwargs = dict(
        policy_pos_logits=policy_pos_logits,
        policy_neg_logits=policy_neg_logits,
        reference_pos_logits=reference_pos_logits,
        reference_neg_logits=reference_neg_logits,
        pos_labels=pos_labels,
        neg_labels=neg_labels,
    )

    loss_mod = DPOLoss(beta=0.1, label_smoothing=0.0, average_logprobs=False)
    loss, metrics = loss_mod(**kwargs)
    jax.block_until_ready((loss, metrics))
    ref_loss = _ref_dpo(0.1, 0.0, False, **kwargs)
    assert jnp.allclose(loss, ref_loss, rtol=1e-4, atol=1e-5), (loss, ref_loss)

    # averaged log-probs + label smoothing config
    loss_mod_avg = DPOLoss(beta=0.25, label_smoothing=0.1, average_logprobs=True)
    loss_avg, _ = loss_mod_avg(**kwargs)
    jax.block_until_ready(loss_avg)
    ref_loss_avg = _ref_dpo(0.25, 0.1, True, **kwargs)
    assert jnp.allclose(loss_avg, ref_loss_avg, rtol=1e-4, atol=1e-5), (loss_avg, ref_loss_avg)

    # --- tiled path: exercise the seq/vocab grid + online logsumexp ---
    B2, S2, V2 = 2, 256, 512
    kk = jax.random.split(jax.random.PRNGKey(1), 6)
    big = [jax.random.normal(kk[i], (B2, S2, V2), jnp.float32) for i in range(4)]
    labp = jax.random.randint(kk[4], (B2, S2), 0, V2, jnp.int32).at[:, :17].set(-100)
    labn = jax.random.randint(kk[5], (B2, S2), 0, V2, jnp.int32).at[:, :5].set(-100)
    got = dpo_masked_logprob_sums(big[0], big[1], big[2], big[3], labp, labn,
                                  seq_tile=128, vocab_tile=128)
    jax.block_until_ready(got)
    want = (_ref_logprobs(big[0], labp, False), _ref_logprobs(big[1], labn, False),
            _ref_logprobs(big[2], labp, False), _ref_logprobs(big[3], labn, False),
            (labp != -100).sum(-1).astype(jnp.float32),
            (labn != -100).sum(-1).astype(jnp.float32))
    for g, w in zip(got, want):
        assert jnp.allclose(g, w, rtol=1e-4, atol=1e-3), (g, w)

    print("KERNEL_OK")
</pallas_src>

<mosaic_0001>
module attributes {stable_mosaic.version = 11 : i64} {
  func.func @_dpo_logprob_kernel(%arg0: i32, %arg1: i32, %arg2: memref<2x8xi32, #tpu.memory_space<vmem>>, %arg3: memref<2x8xi32, #tpu.memory_space<vmem>>, %arg4: memref<2x8x32xf32, #tpu.memory_space<vmem>>, %arg5: memref<2x8x32xf32, #tpu.memory_space<vmem>>, %arg6: memref<2x8x32xf32, #tpu.memory_space<vmem>>, %arg7: memref<2x8x32xf32, #tpu.memory_space<vmem>>, %arg8: memref<2x1xf32, #tpu.memory_space<vmem>>, %arg9: memref<2x1xf32, #tpu.memory_space<vmem>>, %arg10: memref<2x1xf32, #tpu.memory_space<vmem>>, %arg11: memref<2x1xf32, #tpu.memory_space<vmem>>, %arg12: memref<2x1xf32, #tpu.memory_space<vmem>>, %arg13: memref<2x1xf32, #tpu.memory_space<vmem>>, %arg14: memref<4x2x8xf32, #tpu.memory_space<vmem>>, %arg15: memref<4x2x8xf32, #tpu.memory_space<vmem>>, %arg16: memref<4x2x8xf32, #tpu.memory_space<vmem>>) attributes {dimension_semantics = [#tpu.dimension_semantics<arbitrary>, #tpu.dimension_semantics<arbitrary>], iteration_bounds = array<i64: 1, 1>, scalar_prefetch = 0 : i64, scratch_operands = 3 : i64, tpu.core_type = #tpu.core_type<tc>, window_params = [{transform_indices = @transform_0, window_bounds = array<i64: 2, 8>}, {transform_indices = @transform_1, window_bounds = array<i64: 2, 8>}, {transform_indices = @transform_2, window_bounds = array<i64: 2, 8, 32>}, {transform_indices = @transform_3, window_bounds = array<i64: 2, 8, 32>}, {transform_indices = @transform_4, window_bounds = array<i64: 2, 8, 32>}, {transform_indices = @transform_5, window_bounds = array<i64: 2, 8, 32>}, {pipeline_mode = #tpu.pipeline_mode<synchronous>, transform_indices = @transform_6, window_bounds = array<i64: 2, 1>}, {pipeline_mode = #tpu.pipeline_mode<synchronous>, transform_indices = @transform_7, window_bounds = array<i64: 2, 1>}, {pipeline_mode = #tpu.pipeline_mode<synchronous>, transform_indices = @transform_8, window_bounds = array<i64: 2, 1>}, {pipeline_mode = #tpu.pipeline_mode<synchronous>, transform_indices = @transform_9, window_bounds = array<i64: 2, 1>}, {pipeline_mode = #tpu.pipeline_mode<synchronous>, transform_indices = @transform_10, window_bounds = array<i64: 2, 1>}, {pipeline_mode = #tpu.pipeline_mode<synchronous>, transform_indices = @transform_11, window_bounds = array<i64: 2, 1>}]} {
    %c0_i32 = arith.constant 0 : i32
    %0 = arith.cmpi eq, %arg0, %c0_i32 : i32
    %c0_i32_0 = arith.constant 0 : i32
    %1 = arith.cmpi eq, %arg1, %c0_i32_0 : i32
    %2 = arith.andi %0, %1 : i1
    %3 = arith.extui %2 : i1 to i32
    %c0_i32_1 = arith.constant 0 : i32
    %4 = arith.cmpi ne, %3, %c0_i32_1 : i32
    scf.if %4 {
      %cst_106 = arith.constant 0.000000e+00 : f32
      %158 = vector.broadcast %cst_106 : f32 to vector<2x1xf32>
      %c0_107 = arith.constant 0 : index
      %c0_108 = arith.constant 0 : index
      %159 = vector.load %arg8[%c0_107, %c0_108] : memref<2x1xf32, #tpu.memory_space<vmem>>, vector<2x1xf32>
      tpu.vector_store %arg8[%c0_107, %c0_108], %158 {strides = array<i32>} : memref<2x1xf32, #tpu.memory_space<vmem>>, vector<2x1xf32>,
      %cst_109 = arith.constant 0.000000e+00 : f32
      %160 = vector.broadcast %cst_109 : f32 to vector<2x1xf32>
      %c0_110 = arith.constant 0 : index
      %c0_111 = arith.constant 0 : index
      %161 = vector.load %arg9[%c0_110, %c0_111] : memref<2x1xf32, #tpu.memory_space<vmem>>, vector<2x1xf32>
      tpu.vector_store %arg9[%c0_110, %c0_111], %160 {strides = array<i32>} : memref<2x1xf32, #tpu.memory_space<vmem>>, vector<2x1xf32>,
      %cst_112 = arith.constant 0.000000e+00 : f32
      %162 = vector.broadcast %cst_112 : f32 to vector<2x1xf32>
      %c0_113 = arith.constant 0 : index
      %c0_114 = arith.constant 0 : index
      %163 = vector.load %arg10[%c0_113, %c0_114] : memref<2x1xf32, #tpu.memory_space<vmem>>, vector<2x1xf32>
      tpu.vector_store %arg10[%c0_113, %c0_114], %162 {strides = array<i32>} : memref<2x1xf32, #tpu.memory_space<vmem>>, vector<2x1xf32>,
      %cst_115 = arith.constant 0.000000e+00 : f32
      %164 = vector.broadcast %cst_115 : f32 to vector<2x1xf32>
      %c0_116 = arith.constant 0 : index
      %c0_117 = arith.constant 0 : index
      %165 = vector.load %arg11[%c0_116, %c0_117] : memref<2x1xf32, #tpu.memory_space<vmem>>, vector<2x1xf32>
      tpu.vector_store %arg11[%c0_116, %c0_117], %164 {strides = array<i32>} : memref<2x1xf32, #tpu.memory_space<vmem>>, vector<2x1xf32>,
      %cst_118 = arith.constant 0.000000e+00 : f32
      %166 = vector.broadcast %cst_118 : f32 to vector<2x1xf32>
      %c0_119 = arith.constant 0 : index
      %c0_120 = arith.constant 0 : index
      %167 = vector.load %arg12[%c0_119, %c0_120] : memref<2x1xf32, #tpu.memory_space<vmem>>, vector<2x1xf32>
      tpu.vector_store %arg12[%c0_119, %c0_120], %166 {strides = array<i32>} : memref<2x1xf32, #tpu.memory_space<vmem>>, vector<2x1xf32>,
      %cst_121 = arith.constant 0.000000e+00 : f32
      %168 = vector.broadcast %cst_121 : f32 to vector<2x1xf32>
      %c0_122 = arith.constant 0 : index
      %c0_123 = arith.constant 0 : index
      %169 = vector.load %arg13[%c0_122, %c0_123] : memref<2x1xf32, #tpu.memory_space<vmem>>, vector<2x1xf32>
      tpu.vector_store %arg13[%c0_122, %c0_123], %168 {strides = array<i32>} : memref<2x1xf32, #tpu.memory_space<vmem>>, vector<2x1xf32>,
    } else {
    }
    %c0_i32_2 = arith.constant 0 : i32
    %5 = arith.cmpi eq, %arg1, %c0_i32_2 : i32
    %6 = arith.extui %5 : i1 to i32
    %c0_i32_3 = arith.constant 0 : i32
    %7 = arith.cmpi ne, %6, %c0_i32_3 : i32
    scf.if %7 {
      %cst_106 = arith.constant 0xFF800000 : f32
      %158 = vector.broadcast %cst_106 : f32 to vector<4x2x8xf32>
      %c0_107 = arith.constant 0 : index
      %c0_108 = arith.constant 0 : index
      %c0_109 = arith.constant 0 : index
      %159 = vector.load %arg14[%c0_107, %c0_108, %c0_109] : memref<4x2x8xf32, #tpu.memory_space<vmem>>, vector<4x2x8xf32>
      tpu.vector_store %arg14[%c0_107, %c0_108, %c0_109], %158 {strides = array<i32>} : memref<4x2x8xf32, #tpu.memory_space<vmem>>, vector<4x2x8xf32>,
      %cst_110 = arith.constant 0.000000e+00 : f32
      %160 = vector.broadcast %cst_110 : f32 to vector<4x2x8xf32>
      %c0_111 = arith.constant 0 : index
      %c0_112 = arith.constant 0 : index
      %c0_113 = arith.constant 0 : index
      %161 = vector.load %arg15[%c0_111, %c0_112, %c0_113] : memref<4x2x8xf32, #tpu.memory_space<vmem>>, vector<4x2x8xf32>
      tpu.vector_store %arg15[%c0_111, %c0_112, %c0_113], %160 {strides = array<i32>} : memref<4x2x8xf32, #tpu.memory_space<vmem>>, vector<4x2x8xf32>,
      %cst_114 = arith.constant 0.000000e+00 : f32
      %162 = vector.broadcast %cst_114 : f32 to vector<4x2x8xf32>
      %c0_115 = arith.constant 0 : index
      %c0_116 = arith.constant 0 : index
      %c0_117 = arith.constant 0 : index
      %163 = vector.load %arg16[%c0_115, %c0_116, %c0_117] : memref<4x2x8xf32, #tpu.memory_space<vmem>>, vector<4x2x8xf32>
      tpu.vector_store %arg16[%c0_115, %c0_116, %c0_117], %162 {strides = array<i32>} : memref<4x2x8xf32, #tpu.memory_space<vmem>>, vector<4x2x8xf32>,
    } else {
    }
    %c32_i32 = arith.constant 32 : i32
    %8 = arith.muli %arg1, %c32_i32 : i32
    %c0 = arith.constant 0 : index
    %c0_4 = arith.constant 0 : index
    %9 = vector.load %arg2[%c0, %c0_4] : memref<2x8xi32, #tpu.memory_space<vmem>>, vector<2x8xi32>
    %10 = vector.broadcast %8 : i32 to vector<2x8xi32>
    %11 = arith.subi %9, %10 : vector<2x8xi32>
    %12 = tpu.iota {dimensions = array<i32: 2>} : vector<2x8x32xi32>
    %13 = vector.shape_cast %11 : vector<2x8xi32> to vector<2x8x1xi32>
    %14 = vector.broadcast %13 : vector<2x8x1xi32> to vector<2x8x32xi32>
    %15 = arith.cmpi eq, %12, %14 : vector<2x8x32xi32>
    %c-100_i32 = arith.constant -100 : i32
    %16 = vector.broadcast %c-100_i32 : i32 to vector<2x8xi32>
    %17 = arith.cmpi ne, %9, %16 : vector<2x8xi32>
    %18 = arith.extui %17 : vector<2x8xi1> to vector<2x8xi32>
    %19 = arith.sitofp %18 : vector<2x8xi32> to vector<2x8xf32>
    %c0_5 = arith.constant 0 : index
    %c0_6 = arith.constant 0 : index
    %20 = vector.load %arg3[%c0_5, %c0_6] : memref<2x8xi32, #tpu.memory_space<vmem>>, vector<2x8xi32>
    %21 = vector.broadcast %8 : i32 to vector<2x8xi32>
    %22 = arith.subi %20, %21 : vector<2x8xi32>
    %23 = tpu.iota {dimensions = array<i32: 2>} : vector<2x8x32xi32>
    %24 = vector.shape_cast %22 : vector<2x8xi32> to vector<2x8x1xi32>
    %25 = vector.broadcast %24 : vector<2x8x1xi32> to vector<2x8x32xi32>
    %26 = arith.cmpi eq, %23, %25 : vector<2x8x32xi32>
    %c-100_i32_7 = arith.constant -100 : i32
    %27 = vector.broadcast %c-100_i32_7 : i32 to vector<2x8xi32>
    %28 = arith.cmpi ne, %20, %27 : vector<2x8xi32>
    %29 = arith.extui %28 : vector<2x8xi1> to vector<2x8xi32>
    %30 = arith.sitofp %29 : vector<2x8xi32> to vector<2x8xf32>
    %c0_8 = arith.constant 0 : index
    %c0_9 = arith.constant 0 : index
    %c0_10 = arith.constant 0 : index
    %31 = vector.load %arg4[%c0_8, %c0_9, %c0_10] : memref<2x8x32xf32, #tpu.memory_space<vmem>>, vector<2x8x32xf32>
    %c0_11 = arith.constant 0 : index
    %c0_12 = arith.constant 0 : index
    %c0_13 = arith.constant 0 : index
    %32 = vector.load %arg14[%c0_11, %c0_12, %c0_13] : memref<4x2x8xf32, #tpu.memory_space<vmem>>, vector<1x2x8xf32>
    %33 = vector.shape_cast %32 : vector<1x2x8xf32> to vector<2x8xf32>
    %cst = arith.constant dense<0xFF800000> : vector<2x8xf32>
    %34 = vector.multi_reduction <maximumf>, %31, %cst [2] : vector<2x8x32xf32> to vector<2x8xf32>
    %35 = arith.maximumf %33, %34 : vector<2x8xf32>
    %36 = arith.subf %33, %35 : vector<2x8xf32>
    %37 = math.exp %36 : vector<2x8xf32>
    %c0_14 = arith.constant 0 : index
    %c0_15 = arith.constant 0 : index
    %c0_16 = arith.constant 0 : index
    %38 = vector.load %arg15[%c0_14, %c0_15, %c0_16] : memref<4x2x8xf32, #tpu.memory_space<vmem>>, vector<1x2x8xf32>
    %39 = vector.shape_cast %38 : vector<1x2x8xf32> to vector<2x8xf32>
    %40 = arith.mulf %39, %37 : vector<2x8xf32>
    %41 = vector.shape_cast %35 : vector<2x8xf32> to vector<2x8x1xf32>
    %42 = vector.broadcast %41 : vector<2x8x1xf32> to vector<2x8x32xf32>
    %43 = arith.subf %31, %42 : vector<2x8x32xf32>
    %44 = math.exp %43 : vector<2x8x32xf32>
    %cst_17 = arith.constant dense<0.000000e+00> : vector<2x8xf32>
    %45 = vector.multi_reduction <add>, %44, %cst_17 [2] : vector<2x8x32xf32> to vector<2x8xf32>
    %46 = arith.addf %40, %45 : vector<2x8xf32>
    %c0_18 = arith.constant 0 : index
    %c0_19 = arith.constant 0 : index
    %c0_20 = arith.constant 0 : index
    %47 = vector.load %arg15[%c0_18, %c0_19, %c0_20] : memref<4x2x8xf32, #tpu.memory_space<vmem>>, vector<1x2x8xf32>
    %48 = vector.shape_cast %47 : vector<1x2x8xf32> to vector<2x8xf32>
    %49 = vector.shape_cast %46 : vector<2x8xf32> to vector<1x2x8xf32>
    tpu.vector_store %arg15[%c0_18, %c0_19, %c0_20], %49 {strides = array<i32>} : memref<4x2x8xf32, #tpu.memory_space<vmem>>, vector<1x2x8xf32>,
    %c0_21 = arith.constant 0 : index
    %c0_22 = arith.constant 0 : index
    %c0_23 = arith.constant 0 : index
    %50 = vector.load %arg16[%c0_21, %c0_22, %c0_23] : memref<4x2x8xf32, #tpu.memory_space<vmem>>, vector<1x2x8xf32>
    %51 = vector.shape_cast %50 : vector<1x2x8xf32> to vector<2x8xf32>
    %cst_24 = arith.constant 0.000000e+00 : f32
    %52 = vector.broadcast %cst_24 : f32 to vector<2x8x32xf32>
    %53 = arith.select %15, %31, %52 : vector<2x8x32xi1>, vector<2x8x32xf32>
    %cst_25 = arith.constant dense<0.000000e+00> : vector<2x8xf32>
    %54 = vector.multi_reduction <add>, %53, %cst_25 [2] : vector<2x8x32xf32> to vector<2x8xf32>
    %55 = arith.addf %51, %54 : vector<2x8xf32>
    %c0_26 = arith.constant 0 : index
    %c0_27 = arith.constant 0 : index
    %c0_28 = arith.constant 0 : index
    %56 = vector.load %arg16[%c0_26, %c0_27, %c0_28] : memref<4x2x8xf32, #tpu.memory_space<vmem>>, vector<1x2x8xf32>
    %57 = vector.shape_cast %56 : vector<1x2x8xf32> to vector<2x8xf32>
    %58 = vector.shape_cast %55 : vector<2x8xf32> to vector<1x2x8xf32>
    tpu.vector_store %arg16[%c0_26, %c0_27, %c0_28], %58 {strides = array<i32>} : memref<4x2x8xf32, #tpu.memory_space<vmem>>, vector<1x2x8xf32>,
    %c0_29 = arith.constant 0 : index
    %c0_30 = arith.constant 0 : index
    %c0_31 = arith.constant 0 : index
    %59 = vector.load %arg14[%c0_29, %c0_30, %c0_31] : memref<4x2x8xf32, #tpu.memory_space<vmem>>, vector<1x2x8xf32>
    %60 = vector.shape_cast %59 : vector<1x2x8xf32> to vector<2x8xf32>
    %61 = vector.shape_cast %35 : vector<2x8xf32> to vector<1x2x8xf32>
    tpu.vector_store %arg14[%c0_29, %c0_30, %c0_31], %61 {strides = array<i32>} : memref<4x2x8xf32, #tpu.memory_space<vmem>>, vector<1x2x8xf32>,
    %c0_32 = arith.constant 0 : index
    %c0_33 = arith.constant 0 : index
    %c0_34 = arith.constant 0 : index
    %62 = vector.load %arg5[%c0_32, %c0_33, %c0_34] : memref<2x8x32xf32, #tpu.memory_space<vmem>>, vector<2x8x32xf32>
    %c1 = arith.constant 1 : index
    %c0_35 = arith.constant 0 : index
    %c0_36 = arith.constant 0 : index
    %63 = vector.load %arg14[%c1, %c0_35, %c0_36] : memref<4x2x8xf32, #tpu.memory_space<vmem>>, vector<1x2x8xf32>
    %64 = vector.shape_cast %63 : vector<1x2x8xf32> to vector<2x8xf32>
    %cst_37 = arith.constant dense<0xFF800000> : vector<2x8xf32>
    %65 = vector.multi_reduction <maximumf>, %62, %cst_37 [2] : vector<2x8x32xf32> to vector<2x8xf32>
    %66 = arith.maximumf %64, %65 : vector<2x8xf32>
    %67 = arith.subf %64, %66 : vector<2x8xf32>
    %68 = math.exp %67 : vector<2x8xf32>
    %c1_38 = arith.constant 1 : index
    %c0_39 = arith.constant 0 : index
    %c0_40 = arith.constant 0 : index
    %69 = vector.load %arg15[%c1_38, %c0_39, %c0_40] : memref<4x2x8xf32, #tpu.memory_space<vmem>>, vector<1x2x8xf32>
    %70 = vector.shape_cast %69 : vector<1x2x8xf32> to vector<2x8xf32>
    %71 = arith.mulf %70, %68 : vector<2x8xf32>
    %72 = vector.shape_cast %66 : vector<2x8xf32> to vector<2x8x1xf32>
    %73 = vector.broadcast %72 : vector<2x8x1xf32> to vector<2x8x32xf32>
    %74 = arith.subf %62, %73 : vector<2x8x32xf32>
    %75 = math.exp %74 : vector<2x8x32xf32>
    %cst_41 = arith.constant dense<0.000000e+00> : vector<2x8xf32>
    %76 = vector.multi_reduction <add>, %75, %cst_41 [2] : vector<2x8x32xf32> to vector<2x8xf32>
    %77 = arith.addf %71, %76 : vector<2x8xf32>
    %c1_42 = arith.constant 1 : index
    %c0_43 = arith.constant 0 : index
    %c0_44 = arith.constant 0 : index
    %78 = vector.load %arg15[%c1_42, %c0_43, %c0_44] : memref<4x2x8xf32, #tpu.memory_space<vmem>>, vector<1x2x8xf32>
    %79 = vector.shape_cast %78 : vector<1x2x8xf32> to vector<2x8xf32>
    %80 = vector.shape_cast %77 : vector<2x8xf32> to vector<1x2x8xf32>
    tpu.vector_store %arg15[%c1_42, %c0_43, %c0_44], %80 {strides = array<i32>} : memref<4x2x8xf32, #tpu.memory_space<vmem>>, vector<1x2x8xf32>,
    %c1_45 = arith.constant 1 : index
    %c0_46 = arith.constant 0 : index
    %c0_47 = arith.constant 0 : index
    %81 = vector.load %arg16[%c1_45, %c0_46, %c0_47] : memref<4x2x8xf32, #tpu.memory_space<vmem>>, vector<1x2x8xf32>
    %82 = vector.shape_cast %81 : vector<1x2x8xf32> to vector<2x8xf32>
    %cst_48 = arith.constant 0.000000e+00 : f32
    %83 = vector.broadcast %cst_48 : f32 to vector<2x8x32xf32>
    %84 = arith.select %26, %62, %83 : vector<2x8x32xi1>, vector<2x8x32xf32>
    %cst_49 = arith.constant dense<0.000000e+00> : vector<2x8xf32>
    %85 = vector.multi_reduction <add>, %84, %cst_49 [2] : vector<2x8x32xf32> to vector<2x8xf32>
    %86 = arith.addf %82, %85 : vector<2x8xf32>
    %c1_50 = arith.constant 1 : index
    %c0_51 = arith.constant 0 : index
    %c0_52 = arith.constant 0 : index
    %87 = vector.load %arg16[%c1_50, %c0_51, %c0_52] : memref<4x2x8xf32, #tpu.memory_space<vmem>>, vector<1x2x8xf32>
    %88 = vector.shape_cast %87 : vector<1x2x8xf32> to vector<2x8xf32>
    %89 = vector.shape_cast %86 : vector<2x8xf32> to vector<1x2x8xf32>
    tpu.vector_store %arg16[%c1_50, %c0_51, %c0_52], %89 {strides = array<i32>} : memref<4x2x8xf32, #tpu.memory_space<vmem>>, vector<1x2x8xf32>,
    %c1_53 = arith.constant 1 : index
    %c0_54 = arith.constant 0 : index
    %c0_55 = arith.constant 0 : index
    %90 = vector.load %arg14[%c1_53, %c0_54, %c0_55] : memref<4x2x8xf32, #tpu.memory_space<vmem>>, vector<1x2x8xf32>
    %91 = vector.shape_cast %90 : vector<1x2x8xf32> to vector<2x8xf32>
    %92 = vector.shape_cast %66 : vector<2x8xf32> to vector<1x2x8xf32>
    tpu.vector_store %arg14[%c1_53, %c0_54, %c0_55], %92 {strides = array<i32>} : memref<4x2x8xf32, #tpu.memory_space<vmem>>, vector<1x2x8xf32>,
    %c0_56 = arith.constant 0 : index
    %c0_57 = arith.constant 0 : index
    %c0_58 = arith.constant 0 : index
    %93 = vector.load %arg6[%c0_56, %c0_57, %c0_58] : memref<2x8x32xf32, #tpu.memory_space<vmem>>, vector<2x8x32xf32>
    %c2 = arith.constant 2 : index
    %c0_59 = arith.constant 0 : index
    %c0_60 = arith.constant 0 : index
    %94 = vector.load %arg14[%c2, %c0_59, %c0_60] : memref<4x2x8xf32, #tpu.memory_space<vmem>>, vector<1x2x8xf32>
    %95 = vector.shape_cast %94 : vector<1x2x8xf32> to vector<2x8xf32>
    %cst_61 = arith.constant dense<0xFF800000> : vector<2x8xf32>
    %96 = vector.multi_reduction <maximumf>, %93, %cst_61 [2] : vector<2x8x32xf32> to vector<2x8xf32>
    %97 = arith.maximumf %95, %96 : vector<2x8xf32>
    %98 = arith.subf %95, %97 : vector<2x8xf32>
    %99 = math.exp %98 : vector<2x8xf32>
    %c2_62 = arith.constant 2 : index
    %c0_63 = arith.constant 0 : index
    %c0_64 = arith.constant 0 : index
    %100 = vector.load %arg15[%c2_62, %c0_63, %c0_64] : memref<4x2x8xf32, #tpu.memory_space<vmem>>, vector<1x2x8xf32>
    %101 = vector.shape_cast %100 : vector<1x2x8xf32> to vector<2x8xf32>
    %102 = arith.mulf %101, %99 : vector<2x8xf32>
    %103 = vector.shape_cast %97 : vector<2x8xf32> to vector<2x8x1xf32>
    %104 = vector.broadcast %103 : vector<2x8x1xf32> to vector<2x8x32xf32>
    %105 = arith.subf %93, %104 : vector<2x8x32xf32>
    %106 = math.exp %105 : vector<2x8x32xf32>
    %cst_65 = arith.constant dense<0.000000e+00> : vector<2x8xf32>
    %107 = vector.multi_reduction <add>, %106, %cst_65 [2] : vector<2x8x32xf32> to vector<2x8xf32>
    %108 = arith.addf %102, %107 : vector<2x8xf32>
    %c2_66 = arith.constant 2 : index
    %c0_67 = arith.constant 0 : index
    %c0_68 = arith.constant 0 : index
    %109 = vector.load %arg15[%c2_66, %c0_67, %c0_68] : memref<4x2x8xf32, #tpu.memory_space<vmem>>, vector<1x2x8xf32>
    %110 = vector.shape_cast %109 : vector<1x2x8xf32> to vector<2x8xf32>
    %111 = vector.shape_cast %108 : vector<2x8xf32> to vector<1x2x8xf32>
    tpu.vector_store %arg15[%c2_66, %c0_67, %c0_68], %111 {strides = array<i32>} : memref<4x2x8xf32, #tpu.memory_space<vmem>>, vector<1x2x8xf32>,
    %c2_69 = arith.constant 2 : index
    %c0_70 = arith.constant 0 : index
    %c0_71 = arith.constant 0 : index
    %112 = vector.load %arg16[%c2_69, %c0_70, %c0_71] : memref<4x2x8xf32, #tpu.memory_space<vmem>>, vector<1x2x8xf32>
    %113 = vector.shape_cast %112 : vector<1x2x8xf32> to vector<2x8xf32>
    %cst_72 = arith.constant 0.000000e+00 : f32
    %114 = vector.broadcast %cst_72 : f32 to vector<2x8x32xf32>
    %115 = arith.select %15, %93, %114 : vector<2x8x32xi1>, vector<2x8x32xf32>
    %cst_73 = arith.constant dense<0.000000e+00> : vector<2x8xf32>
    %116 = vector.multi_reduction <add>, %115, %cst_73 [2] : vector<2x8x32xf32> to vector<2x8xf32>
    %117 = arith.addf %113, %116 : vector<2x8xf32>
    %c2_74 = arith.constant 2 : index
    %c0_75 = arith.constant 0 : index
    %c0_76 = arith.constant 0 : index
    %118 = vector.load %arg16[%c2_74, %c0_75, %c0_76] : memref<4x2x8xf32, #tpu.memory_space<vmem>>, vector<1x2x8xf32>
    %119 = vector.shape_cast %118 : vector<1x2x8xf32> to vector<2x8xf32>
    %120 = vector.shape_cast %117 : vector<2x8xf32> to vector<1x2x8xf32>
    tpu.vector_store %arg16[%c2_74, %c0_75, %c0_76], %120 {strides = array<i32>} : memref<4x2x8xf32, #tpu.memory_space<vmem>>, vector<1x2x8xf32>,
    %c2_77 = arith.constant 2 : index
    %c0_78 = arith.constant 0 : index
    %c0_79 = arith.constant 0 : index
    %121 = vector.load %arg14[%c2_77, %c0_78, %c0_79] : memref<4x2x8xf32, #tpu.memory_space<vmem>>, vector<1x2x8xf32>
    %122 = vector.shape_cast %121 : vector<1x2x8xf32> to vector<2x8xf32>
    %123 = vector.shape_cast %97 : vector<2x8xf32> to vector<1x2x8xf32>
    tpu.vector_store %arg14[%c2_77, %c0_78, %c0_79], %123 {strides = array<i32>} : memref<4x2x8xf32, #tpu.memory_space<vmem>>, vector<1x2x8xf32>,
    %c0_80 = arith.constant 0 : index
    %c0_81 = arith.constant 0 : index
    %c0_82 = arith.constant 0 : index
    %124 = vector.load %arg7[%c0_80, %c0_81, %c0_82] : memref<2x8x32xf32, #tpu.memory_space<vmem>>, vector<2x8x32xf32>
    %c3 = arith.constant 3 : index
    %c0_83 = arith.constant 0 : index
    %c0_84 = arith.constant 0 : index
    %125 = vector.load %arg14[%c3, %c0_83, %c0_84] : memref<4x2x8xf32, #tpu.memory_space<vmem>>, vector<1x2x8xf32>
    %126 = vector.shape_cast %125 : vector<1x2x8xf32> to vector<2x8xf32>
    %cst_85 = arith.constant dense<0xFF800000> : vector<2x8xf32>
    %127 = vector.multi_reduction <maximumf>, %124, %cst_85 [2] : vector<2x8x32xf32> to vector<2x8xf32>
    %128 = arith.maximumf %126, %127 : vector<2x8xf32>
    %129 = arith.subf %126, %128 : vector<2x8xf32>
    %130 = math.exp %129 : vector<2x8xf32>
    %c3_86 = arith.constant 3 : index
    %c0_87 = arith.constant 0 : index
    %c0_88 = arith.constant 0 : index
    %131 = vector.load %arg15[%c3_86, %c0_87, %c0_88] : memref<4x2x8xf32, #tpu.memory_space<vmem>>, vector<1x2x8xf32>
    %132 = vector.shape_cast %131 : vector<1x2x8xf32> to vector<2x8xf32>
    %133 = arith.mulf %132, %130 : vector<2x8xf32>
    %134 = vector.shape_cast %128 : vector<2x8xf32> to vector<2x8x1xf32>
    %135 = vector.broadcast %134 : vector<2x8x1xf32> to vector<2x8x32xf32>
    %136 = arith.subf %124, %135 : vector<2x8x32xf32>
    %137 = math.exp %136 : vector<2x8x32xf32>
    %cst_89 = arith.constant dense<0.000000e+00> : vector<2x8xf32>
    %138 = vector.multi_reduction <add>, %137, %cst_89 [2] : vector<2x8x32xf32> to vector<2x8xf32>
    %139 = arith.addf %133, %138 : vector<2x8xf32>
    %c3_90 = arith.constant 3 : index
    %c0_91 = arith.constant 0 : index
    %c0_92 = arith.constant 0 : index
    %140 = vector.load %arg15[%c3_90, %c0_91, %c0_92] : memref<4x2x8xf32, #tpu.memory_space<vmem>>, vector<1x2x8xf32>
    %141 = vector.shape_cast %140 : vector<1x2x8xf32> to vector<2x8xf32>
    %142 = vector.shape_cast %139 : vector<2x8xf32> to vector<1x2x8xf32>
    tpu.vector_store %arg15[%c3_90, %c0_91, %c0_92], %142 {strides = array<i32>} : memref<4x2x8xf32, #tpu.memory_space<vmem>>, vector<1x2x8xf32>,
    %c3_93 = arith.constant 3 : index
    %c0_94 = arith.constant 0 : index
    %c0_95 = arith.constant 0 : index
    %143 = vector.load %arg16[%c3_93, %c0_94, %c0_95] : memref<4x2x8xf32, #tpu.memory_space<vmem>>, vector<1x2x8xf32>
    %144 = vector.shape_cast %143 : vector<1x2x8xf32> to vector<2x8xf32>
    %cst_96 = arith.constant 0.000000e+00 : f32
    %145 = vector.broadcast %cst_96 : f32 to vector<2x8x32xf32>
    %146 = arith.select %26, %124, %145 : vector<2x8x32xi1>, vector<2x8x32xf32>
    %cst_97 = arith.constant dense<0.000000e+00> : vector<2x8xf32>
    %147 = vector.multi_reduction <add>, %146, %cst_97 [2] : vector<2x8x32xf32> to vector<2x8xf32>
    %148 = arith.addf %144, %147 : vector<2x8xf32>
    %c3_98 = arith.constant 3 : index
    %c0_99 = arith.constant 0 : index
    %c0_100 = arith.constant 0 : index
    %149 = vector.load %arg16[%c3_98, %c0_99, %c0_100] : memref<4x2x8xf32, #tpu.memory_space<vmem>>, vector<1x2x8xf32>
    %150 = vector.shape_cast %149 : vector<1x2x8xf32> to vector<2x8xf32>
    %151 = vector.shape_cast %148 : vector<2x8xf32> to vector<1x2x8xf32>
    tpu.vector_store %arg16[%c3_98, %c0_99, %c0_100], %151 {strides = array<i32>} : memref<4x2x8xf32, #tpu.memory_space<vmem>>, vector<1x2x8xf32>,
    %c3_101 = arith.constant 3 : index
    %c0_102 = arith.constant 0 : index
    %c0_103 = arith.constant 0 : index
    %152 = vector.load %arg14[%c3_101, %c0_102, %c0_103] : memref<4x2x8xf32, #tpu.memory_space<vmem>>, vector<1x2x8xf32>
    %153 = vector.shape_cast %152 : vector<1x2x8xf32> to vector<2x8xf32>
    %154 = vector.shape_cast %128 : vector<2x8xf32> to vector<1x2x8xf32>
    tpu.vector_store %arg14[%c3_101, %c0_102, %c0_103], %154 {strides = array<i32>} : memref<4x2x8xf32, #tpu.memory_space<vmem>>, vector<1x2x8xf32>,
    %c0_i32_104 = arith.constant 0 : i32
    %155 = arith.cmpi eq, %arg1, %c0_i32_104 : i32
    %156 = arith.extui %155 : i1 to i32
    %c0_i32_105 = arith.constant 0 : i32
    %157 = arith.cmpi ne, %156, %c0_i32_105 : i32
    scf.if %157 {
      %c0_106 = arith.constant 0 : index
      %c0_107 = arith.constant 0 : index
      %c0_108 = arith.constant 0 : index
      %158 = vector.load %arg14[%c0_106, %c0_107, %c0_108] : memref<4x2x8xf32, #tpu.memory_space<vmem>>, vector<1x2x8xf32>
      %159 = vector.shape_cast %158 : vector<1x2x8xf32> to vector<2x8xf32>
      %c0_109 = arith.constant 0 : index
      %c0_110 = arith.constant 0 : index
      %c0_111 = arith.constant 0 : index
      %160 = vector.load %arg15[%c0_109, %c0_110, %c0_111] : memref<4x2x8xf32, #tpu.memory_space<vmem>>, vector<1x2x8xf32>
      %161 = vector.shape_cast %160 : vector<1x2x8xf32> to vector<2x8xf32>
      %162 = math.log %161 : vector<2x8xf32>
      %163 = arith.addf %159, %162 : vector<2x8xf32>
      %c0_112 = arith.constant 0 : index
      %c0_113 = arith.constant 0 : index
      %c0_114 = arith.constant 0 : index
      %164 = vector.load %arg16[%c0_112, %c0_113, %c0_114] : memref<4x2x8xf32, #tpu.memory_space<vmem>>, vector<1x2x8xf32>
      %165 = vector.shape_cast %164 : vector<1x2x8xf32> to vector<2x8xf32>
      %166 = arith.subf %165, %163 : vector<2x8xf32>
      %c0_115 = arith.constant 0 : index
      %c0_116 = arith.constant 0 : index
      %167 = vector.load %arg8[%c0_115, %c0_116] : memref<2x1xf32, #tpu.memory_space<vmem>>, vector<2x1xf32>
      %168 = arith.mulf %166, %19 : vector<2x8xf32>
      %cst_117 = arith.constant dense<0.000000e+00> : vector<2xf32>
      %169 = vector.multi_reduction <add>, %168, %cst_117 [1] : vector<2x8xf32> to vector<2xf32>
      %170 = vector.shape_cast %169 : vector<2xf32> to vector<2x1xf32>
      %171 = arith.addf %167, %170 : vector<2x1xf32>
      %c0_118 = arith.constant 0 : index
      %c0_119 = arith.constant 0 : index
      %172 = vector.load %arg8[%c0_118, %c0_119] : memref<2x1xf32, #tpu.memory_space<vmem>>, vector<2x1xf32>
      tpu.vector_store %arg8[%c0_118, %c0_119], %171 {strides = array<i32>} : memref<2x1xf32, #tpu.memory_space<vmem>>, vector<2x1xf32>,
      %c1_120 = arith.constant 1 : index
      %c0_121 = arith.constant 0 : index
      %c0_122 = arith.constant 0 : index
      %173 = vector.load %arg14[%c1_120, %c0_121, %c0_122] : memref<4x2x8xf32, #tpu.memory_space<vmem>>, vector<1x2x8xf32>
      %174 = vector.shape_cast %173 : vector<1x2x8xf32> to vector<2x8xf32>
      %c1_123 = arith.constant 1 : index
      %c0_124 = arith.constant 0 : index
      %c0_125 = arith.constant 0 : index
      %175 = vector.load %arg15[%c1_123, %c0_124, %c0_125] : memref<4x2x8xf32, #tpu.memory_space<vmem>>, vector<1x2x8xf32>
      %176 = vector.shape_cast %175 : vector<1x2x8xf32> to vector<2x8xf32>
      %177 = math.log %176 : vector<2x8xf32>
      %178 = arith.addf %174, %177 : vector<2x8xf32>
      %c1_126 = arith.constant 1 : index
      %c0_127 = arith.constant 0 : index
      %c0_128 = arith.constant 0 : index
      %179 = vector.load %arg16[%c1_126, %c0_127, %c0_128] : memref<4x2x8xf32, #tpu.memory_space<vmem>>, vector<1x2x8xf32>
      %180 = vector.shape_cast %179 : vector<1x2x8xf32> to vector<2x8xf32>
      %181 = arith.subf %180, %178 : vector<2x8xf32>
      %c0_129 = arith.constant 0 : index
      %c0_130 = arith.constant 0 : index
      %182 = vector.load %arg9[%c0_129, %c0_130] : memref<2x1xf32, #tpu.memory_space<vmem>>, vector<2x1xf32>
      %183 = arith.mulf %181, %30 : vector<2x8xf32>
      %cst_131 = arith.constant dense<0.000000e+00> : vector<2xf32>
      %184 = vector.multi_reduction <add>, %183, %cst_131 [1] : vector<2x8xf32> to vector<2xf32>
      %185 = vector.shape_cast %184 : vector<2xf32> to vector<2x1xf32>
      %186 = arith.addf %182, %185 : vector<2x1xf32>
      %c0_132 = arith.constant 0 : index
      %c0_133 = arith.constant 0 : index
      %187 = vector.load %arg9[%c0_132, %c0_133] : memref<2x1xf32, #tpu.memory_space<vmem>>, vector<2x1xf32>
      tpu.vector_store %arg9[%c0_132, %c0_133], %186 {strides = array<i32>} : memref<2x1xf32, #tpu.memory_space<vmem>>, vector<2x1xf32>,
      %c2_134 = arith.constant 2 : index
      %c0_135 = arith.constant 0 : index
      %c0_136 = arith.constant 0 : index
      %188 = vector.load %arg14[%c2_134, %c0_135, %c0_136] : memref<4x2x8xf32, #tpu.memory_space<vmem>>, vector<1x2x8xf32>
      %189 = vector.shape_cast %188 : vector<1x2x8xf32> to vector<2x8xf32>
      %c2_137 = arith.constant 2 : index
      %c0_138 = arith.constant 0 : index
      %c0_139 = arith.constant 0 : index
      %190 = vector.load %arg15[%c2_137, %c0_138, %c0_139] : memref<4x2x8xf32, #tpu.memory_space<vmem>>, vector<1x2x8xf32>
      %191 = vector.shape_cast %190 : vector<1x2x8xf32> to vector<2x8xf32>
      %192 = math.log %191 : vector<2x8xf32>
      %193 = arith.addf %189, %192 : vector<2x8xf32>
      %c2_140 = arith.constant 2 : index
      %c0_141 = arith.constant 0 : index
      %c0_142 = arith.constant 0 : index
      %194 = vector.load %arg16[%c2_140, %c0_141, %c0_142] : memref<4x2x8xf32, #tpu.memory_space<vmem>>, vector<1x2x8xf32>
      %195 = vector.shape_cast %194 : vector<1x2x8xf32> to vector<2x8xf32>
      %196 = arith.subf %195, %193 : vector<2x8xf32>
      %c0_143 = arith.constant 0 : index
      %c0_144 = arith.constant 0 : index
      %197 = vector.load %arg10[%c0_143, %c0_144] : memref<2x1xf32, #tpu.memory_space<vmem>>, vector<2x1xf32>
      %198 = arith.mulf %196, %19 : vector<2x8xf32>
      %cst_145 = arith.constant dense<0.000000e+00> : vector<2xf32>
      %199 = vector.multi_reduction <add>, %198, %cst_145 [1] : vector<2x8xf32> to vector<2xf32>
      %200 = vector.shape_cast %199 : vector<2xf32> to vector<2x1xf32>
      %201 = arith.addf %197, %200 : vector<2x1xf32>
      %c0_146 = arith.constant 0 : index
      %c0_147 = arith.constant 0 : index
      %202 = vector.load %arg10[%c0_146, %c0_147] : memref<2x1xf32, #tpu.memory_space<vmem>>, vector<2x1xf32>
      tpu.vector_store %arg10[%c0_146, %c0_147], %201 {strides = array<i32>} : memref<2x1xf32, #tpu.memory_space<vmem>>, vector<2x1xf32>,
      %c3_148 = arith.constant 3 : index
      %c0_149 = arith.constant 0 : index
      %c0_150 = arith.constant 0 : index
      %203 = vector.load %arg14[%c3_148, %c0_149, %c0_150] : memref<4x2x8xf32, #tpu.memory_space<vmem>>, vector<1x2x8xf32>
      %204 = vector.shape_cast %203 : vector<1x2x8xf32> to vector<2x8xf32>
      %c3_151 = arith.constant 3 : index
      %c0_152 = arith.constant 0 : index
      %c0_153 = arith.constant 0 : index
      %205 = vector.load %arg15[%c3_151, %c0_152, %c0_153] : memref<4x2x8xf32, #tpu.memory_space<vmem>>, vector<1x2x8xf32>
      %206 = vector.shape_cast %205 : vector<1x2x8xf32> to vector<2x8xf32>
      %207 = math.log %206 : vector<2x8xf32>
      %208 = arith.addf %204, %207 : vector<2x8xf32>
      %c3_154 = arith.constant 3 : index
      %c0_155 = arith.constant 0 : index
      %c0_156 = arith.constant 0 : index
      %209 = vector.load %arg16[%c3_154, %c0_155, %c0_156] : memref<4x2x8xf32, #tpu.memory_space<vmem>>, vector<1x2x8xf32>
      %210 = vector.shape_cast %209 : vector<1x2x8xf32> to vector<2x8xf32>
      %211 = arith.subf %210, %208 : vector<2x8xf32>
      %c0_157 = arith.constant 0 : index
      %c0_158 = arith.constant 0 : index
      %212 = vector.load %arg11[%c0_157, %c0_158] : memref<2x1xf32, #tpu.memory_space<vmem>>, vector<2x1xf32>
      %213 = arith.mulf %211, %30 : vector<2x8xf32>
      %cst_159 = arith.constant dense<0.000000e+00> : vector<2xf32>
      %214 = vector.multi_reduction <add>, %213, %cst_159 [1] : vector<2x8xf32> to vector<2xf32>
      %215 = vector.shape_cast %214 : vector<2xf32> to vector<2x1xf32>
      %216 = arith.addf %212, %215 : vector<2x1xf32>
      %c0_160 = arith.constant 0 : index
      %c0_161 = arith.constant 0 : index
      %217 = vector.load %arg11[%c0_160, %c0_161] : memref<2x1xf32, #tpu.memory_space<vmem>>, vector<2x1xf32>
      tpu.vector_store %arg11[%c0_160, %c0_161], %216 {strides = array<i32>} : memref<2x1xf32, #tpu.memory_space<vmem>>, vector<2x1xf32>,
      %c0_162 = arith.constant 0 : index
      %c0_163 = arith.constant 0 : index
      %218 = vector.load %arg12[%c0_162, %c0_163] : memref<2x1xf32, #tpu.memory_space<vmem>>, vector<2x1xf32>
      %cst_164 = arith.constant dense<0.000000e+00> : vector<2xf32>
      %219 = vector.multi_reduction <add>, %19, %cst_164 [1] : vector<2x8xf32> to vector<2xf32>
      %220 = vector.shape_cast %219 : vector<2xf32> to vector<2x1xf32>
      %221 = arith.addf %218, %220 : vector<2x1xf32>
      %c0_165 = arith.constant 0 : index
      %c0_166 = arith.constant 0 : index
      %222 = vector.load %arg12[%c0_165, %c0_166] : memref<2x1xf32, #tpu.memory_space<vmem>>, vector<2x1xf32>
      tpu.vector_store %arg12[%c0_165, %c0_166], %221 {strides = array<i32>} : memref<2x1xf32, #tpu.memory_space<vmem>>, vector<2x1xf32>,
      %c0_167 = arith.constant 0 : index
      %c0_168 = arith.constant 0 : index
      %223 = vector.load %arg13[%c0_167, %c0_168] : memref<2x1xf32, #tpu.memory_space<vmem>>, vector<2x1xf32>
      %cst_169 = arith.constant dense<0.000000e+00> : vector<2xf32>
      %224 = vector.multi_reduction <add>, %30, %cst_169 [1] : vector<2x8xf32> to vector<2xf32>
      %225 = vector.shape_cast %224 : vector<2xf32> to vector<2x1xf32>
      %226 = arith.addf %223, %225 : vector<2x1xf32>
      %c0_170 = arith.constant 0 : index
      %c0_171 = arith.constant 0 : index
      %227 = vector.load %arg13[%c0_170, %c0_171] : memref<2x1xf32, #tpu.memory_space<vmem>>, vector<2x1xf32>
      tpu.vector_store %arg13[%c0_170, %c0_171], %226 {strides = array<i32>} : memref<2x1xf32, #tpu.memory_space<vmem>>, vector<2x1xf32>,
    } else {
    }
    return
  }
  func.func @transform_0(%arg0: i32, %arg1: i32) -> (i32, i32) {
    %c0_i32 = arith.constant 0 : i32
    %c0_i32_0 = arith.constant 0 : i32
    return %c0_i32, %arg0 : i32, i32
  }
  func.func @transform_1(%arg0: i32, %arg1: i32) -> (i32, i32) {
    %c0_i32 = arith.constant 0 : i32
    %c0_i32_0 = arith.constant 0 : i32
    return %c0_i32, %arg0 : i32, i32
  }
  func.func @transform_2(%arg0: i32, %arg1: i32) -> (i32, i32, i32) {
    %c0_i32 = arith.constant 0 : i32
    %c0_i32_0 = arith.constant 0 : i32
    return %c0_i32, %arg0, %arg1 : i32, i32, i32
  }
  func.func @transform_3(%arg0: i32, %arg1: i32) -> (i32, i32, i32) {
    %c0_i32 = arith.constant 0 : i32
    %c0_i32_0 = arith.constant 0 : i32
    return %c0_i32, %arg0, %arg1 : i32, i32, i32
  }
  func.func @transform_4(%arg0: i32, %arg1: i32) -> (i32, i32, i32) {
    %c0_i32 = arith.constant 0 : i32
    %c0_i32_0 = arith.constant 0 : i32
    return %c0_i32, %arg0, %arg1 : i32, i32, i32
  }
  func.func @transform_5(%arg0: i32, %arg1: i32) -> (i32, i32, i32) {
    %c0_i32 = arith.constant 0 : i32
    %c0_i32_0 = arith.constant 0 : i32
    return %c0_i32, %arg0, %arg1 : i32, i32, i32
  }
  func.func @transform_6(%arg0: i32, %arg1: i32) -> (i32, i32) {
    %c0_i32 = arith.constant 0 : i32
    %c0_i32_0 = arith.constant 0 : i32
    %c0_i32_1 = arith.constant 0 : i32
    return %c0_i32, %c0_i32_0 : i32, i32
  }
  func.func @transform_7(%arg0: i32, %arg1: i32) -> (i32, i32) {
    %c0_i32 = arith.constant 0 : i32
    %c0_i32_0 = arith.constant 0 : i32
    %c0_i32_1 = arith.constant 0 : i32
    return %c0_i32, %c0_i32_0 : i32, i32
  }
  func.func @transform_8(%arg0: i32, %arg1: i32) -> (i32, i32) {
    %c0_i32 = arith.constant 0 : i32
    %c0_i32_0 = arith.constant 0 : i32
    %c0_i32_1 = arith.constant 0 : i32
    return %c0_i32, %c0_i32_0 : i32, i32
  }
  func.func @transform_9(%arg0: i32, %arg1: i32) -> (i32, i32) {
    %c0_i32 = arith.constant 0 : i32
    %c0_i32_0 = arith.constant 0 : i32
    %c0_i32_1 = arith.constant 0 : i32
    return %c0_i32, %c0_i32_0 : i32, i32
  }
  func.func @transform_10(%arg0: i32, %arg1: i32) -> (i32, i32) {
    %c0_i32 = arith.constant 0 : i32
    %c0_i32_0 = arith.constant 0 : i32
    %c0_i32_1 = arith.constant 0 : i32
    return %c0_i32, %c0_i32_0 : i32, i32
  }
  func.func @transform_11(%arg0: i32, %arg1: i32) -> (i32, i32) {
    %c0_i32 = arith.constant 0 : i32
    %c0_i32_0 = arith.constant 0 : i32
    %c0_i32_1 = arith.constant 0 : i32
    return %c0_i32, %c0_i32_0 : i32, i32
  }
}

</mosaic_0001>

<llo_original>
// kernel: tpu_custom_call.1
$region0: #{tpu_custom_call.1}
  #allocation0 [shape = 'u32[]', space=smem, size = 0x4, offset = 0x4, fixed_abs, tag = 'smem constant byte address 0x4 - core index']
  #allocation1 [shape = 'u32[72,128]{1,0:T(1,128)}', space=vmem, size = 0x9000, scoped, tag = 'internal scratch']
  #allocation2 [shape = 'f32[4,2,8]{2,1,0:T(2,128)}', space=vmem, size = 0x1000, scoped, tag = 'scratch operand']
  #allocation3 [shape = 'f32[4,2,8]{2,1,0:T(2,128)}', space=vmem, size = 0x1000, scoped, tag = 'scratch operand']
  #allocation4 [shape = 'f32[4,2,8]{2,1,0:T(2,128)}', space=vmem, size = 0x1000, scoped, tag = 'scratch operand']
  %s0 = inlined_call_operand.hbm [shape: s32[2,8], index: 0, kind: input, shape index: {}]
  %s1 = inlined_call_operand.hbm [shape: s32[2,8], index: 1, kind: input, shape index: {}]
  %s2 = inlined_call_operand.hbm [shape: f32[2,8,32], index: 2, kind: input, shape index: {}]
  %s3 = inlined_call_operand.hbm [shape: f32[2,8,32], index: 3, kind: input, shape index: {}]
  %s4 = inlined_call_operand.hbm [shape: f32[2,8,32], index: 4, kind: input, shape index: {}]
  %s5 = inlined_call_operand.hbm [shape: f32[2,8,32], index: 5, kind: input, shape index: {}]
  %s6 = inlined_call_operand.vmem [shape: f32[2,1], index: 6, kind: output, shape index: {0}]
  %s7 = inlined_call_operand.vmem [shape: f32[2,1], index: 7, kind: output, shape index: {1}]
  %s8 = inlined_call_operand.vmem [shape: f32[2,1], index: 8, kind: output, shape index: {2}]
  %s9 = inlined_call_operand.vmem [shape: f32[2,1], index: 9, kind: output, shape index: {3}]
  %s10 = inlined_call_operand.vmem [shape: f32[2,1], index: 10, kind: output, shape index: {4}]
  %s11 = inlined_call_operand.vmem [shape: f32[2,1], index: 11, kind: output, shape index: {5}]
  %12 = xla_tuple %s6, %s7, %s8, %s9, %s10, %s11
  %s13 = sld [smem:[#allocation0]]
  $region110: #{tpu_custom_call.1} parent=0
    _
  %s15 = ssub.s32 1, %s13
  %s16 = scalar_select 0, %s15, %s13
  $region1: #{tpu_custom_call.1} parent=0
    #allocation5 [shape = 'u8[1024]{0}', space=vmem, size = 0x400, scoped, tag = 'input window, operand 0, single buffered']
    #allocation6 [shape = 's32[1]{0}', space=sflag, size = 0x4, scoped, tag = 'scoped memory for tpu_custom_call.1']
    #allocation7 [shape = 'u8[1024]{0}', space=vmem, size = 0x400, scoped, tag = 'input window, operand 1, single buffered']
    #allocation8 [shape = 's32[1]{0}', space=sflag, size = 0x4, scoped, tag = 'scoped memory for tpu_custom_call.1']
    #allocation9 [shape = 'u8[8192]{0}', space=vmem, size = 0x2000, scoped, tag = 'input window, operand 2, single buffered']
    #allocation10 [shape = 'u8[8192]{0}', space=vmem, size = 0x2000, scoped, tag = 'input window, operand 3, single buffered']
    #allocation11 [shape = 's32[1]{0}', space=sflag, size = 0x4, scoped, tag = 'scoped memory for tpu_custom_call.1']
    #allocation12 [shape = 'u8[8192]{0}', space=vmem, size = 0x2000, scoped, tag = 'input window, operand 4, single buffered']
    #allocation13 [shape = 'u8[8192]{0}', space=vmem, size = 0x2000, scoped, tag = 'input window, operand 5, single buffered']
    #allocation14 [shape = 's32[1]{0}', space=sflag, size = 0x4, scoped, tag = 'scoped memory for tpu_custom_call.1']
    %17 = vsyncpa [#allocation6], 0
    %18 = vsyncpa [#allocation8], 0
    %19 = vsyncpa [#allocation11], 0
    %20 = vsyncpa [#allocation14], 0
    // Predicated region
    $region2: #{tpu_custom_call.1} parent=1 // pred_check
      _
    $region3: #{tpu_custom_call.1} parent=1 // pred_check_branch
      %22 = sbr.rel (0) target = $region5
    $region4: #{tpu_custom_call.1} parent=1 // pred_region
      %24 = vsyncadd [#allocation6], 0
      %s26 = sshll.u32 %s0, 4
      %s27 = int_to_ptr.hbm [resolvable:$true] %s26
      %s28 = sshll.u32 [#allocation5], 4
      %s29 = int_to_ptr.vmem [resolvable:$true] %s28
      %31 = dma.hbm_to_vmem [thread:$0]  %s27, 32, %s29, [#allocation6]
    $region5: #{tpu_custom_call.1} parent=1 // pred_fallthru
      _
    // Predicated region
    $region6: #{tpu_custom_call.1} parent=1 // pred_check
      _
    $region7: #{tpu_custom_call.1} parent=1 // pred_check_branch
      %33 = sbr.rel (0) target = $region9
    $region8: #{tpu_custom_call.1} parent=1 // pred_region
      %35 = vsyncadd [#allocation8], 0
      %s37 = sshll.u32 %s1, 4
      %s38 = int_to_ptr.hbm [resolvable:$true] %s37
      %s39 = sshll.u32 [#allocation7], 4
      %s40 = int_to_ptr.vmem [resolvable:$true] %s39
      %42 = dma.hbm_to_vmem [thread:$0]  %s38, 32, %s40, [#allocation8]
    $region9: #{tpu_custom_call.1} parent=1 // pred_fallthru
      _
    // Predicated region
    $region10: #{tpu_custom_call.1} parent=1 // pred_check
      _
    $region11: #{tpu_custom_call.1} parent=1 // pred_check_branch
      %44 = sbr.rel (0) target = $region13
    $region12: #{tpu_custom_call.1} parent=1 // pred_region
      %46 = vsyncadd [#allocation8], 0
      %s47 = sshll.u32 %s2, 4
      %s48 = int_to_ptr.hbm [resolvable:$true] %s47
      %s49 = sshll.u32 [#allocation9], 4
      %s50 = int_to_ptr.vmem [resolvable:$true] %s49
      %55 = dma.hbm_to_vmem [thread:$0]  %s48, 256, %s50, [#allocation8], 128, 128, 8
    $region13: #{tpu_custom_call.1} parent=1 // pred_fallthru
      _
    // Predicated region
    $region14: #{tpu_custom_call.1} parent=1 // pred_check
      _
    $region15: #{tpu_custom_call.1} parent=1 // pred_check_branch
      %57 = sbr.rel (0) target = $region17
    $region16: #{tpu_custom_call.1} parent=1 // pred_region
      %59 = vsyncadd [#allocation11], 0
      %s60 = sshll.u32 %s3, 4
      %s61 = int_to_ptr.hbm [resolvable:$true] %s60
      %s62 = sshll.u32 [#allocation10], 4
      %s63 = int_to_ptr.vmem [resolvable:$true] %s62
      %68 = dma.hbm_to_vmem [thread:$0]  %s61, 256, %s63, [#allocation11], 128, 128, 8
    $region17: #{tpu_custom_call.1} parent=1 // pred_fallthru
      _
    // Predicated region
    $region18: #{tpu_custom_call.1} parent=1 // pred_check
      _
    $region19: #{tpu_custom_call.1} parent=1 // pred_check_branch
      %70 = sbr.rel (0) target = $region21
    $region20: #{tpu_custom_call.1} parent=1 // pred_region
      %72 = vsyncadd [#allocation11], 0
      %s73 = sshll.u32 %s4, 4
      %s74 = int_to_ptr.hbm [resolvable:$true] %s73
      %s75 = sshll.u32 [#allocation12], 4
      %s76 = int_to_ptr.vmem [resolvable:$true] %s75
      %81 = dma.hbm_to_vmem [thread:$0]  %s74, 256, %s76, [#allocation11], 128, 128, 8
    $region21: #{tpu_custom_call.1} parent=1 // pred_fallthru
      _
    // Predicated region
    $region22: #{tpu_custom_call.1} parent=1 // pred_check
      _
    $region23: #{tpu_custom_call.1} parent=1 // pred_check_branch
      %83 = sbr.rel (0) target = $region25
    $region24: #{tpu_custom_call.1} parent=1 // pred_region
      %85 = vsyncadd [#allocation14], 0
      %s86 = sshll.u32 %s5, 4
      %s87 = int_to_ptr.hbm [resolvable:$true] %s86
      %s88 = sshll.u32 [#allocation13], 4
      %s89 = int_to_ptr.vmem [resolvable:$true] %s88
      %94 = dma.hbm_to_vmem [thread:$0]  %s87, 256, %s89, [#allocation14], 128, 128, 8
    $region25: #{tpu_custom_call.1} parent=1 // pred_fallthru
      _
    // Predicated region
    $region26: #{tpu_custom_call.1} parent=1 // pred_check
      _
    $region27: #{tpu_custom_call.1} parent=1 // pred_check_branch
      %96 = sbr.rel (0) target = $region29
    $region28: #{tpu_custom_call.1} parent=1 // pred_region
      %98 = dma.done [#allocation6], 32
    $region29: #{tpu_custom_call.1} parent=1 // pred_fallthru
      _
    // Predicated region
    $region30: #{tpu_custom_call.1} parent=1 // pred_check
      _
    $region31: #{tpu_custom_call.1} parent=1 // pred_check_branch
      %100 = sbr.rel (0) target = $region33
    $region32: #{tpu_custom_call.1} parent=1 // pred_region
      %102 = dma.done [#allocation8], 32
    $region33: #{tpu_custom_call.1} parent=1 // pred_fallthru
      _
    // Predicated region
    $region34: #{tpu_custom_call.1} parent=1 // pred_check
      _
    $region35: #{tpu_custom_call.1} parent=1 // pred_check_branch
      %104 = sbr.rel (0) target = $region37
    $region36: #{tpu_custom_call.1} parent=1 // pred_region
      %106 = dma.done [#allocation8], 256
    $region37: #{tpu_custom_call.1} parent=1 // pred_fallthru
      _
    // Predicated region
    $region38: #{tpu_custom_call.1} parent=1 // pred_check
      _
    $region39: #{tpu_custom_call.1} parent=1 // pred_check_branch
      %108 = sbr.rel (0) target = $region41
    $region40: #{tpu_custom_call.1} parent=1 // pred_region
      %110 = dma.done [#allocation11], 256
    $region41: #{tpu_custom_call.1} parent=1 // pred_fallthru
      _
    // Predicated region
    $region42: #{tpu_custom_call.1} parent=1 // pred_check
      _
    $region43: #{tpu_custom_call.1} parent=1 // pred_check_branch
      %112 = sbr.rel (0) target = $region45
    $region44: #{tpu_custom_call.1} parent=1 // pred_region
      %114 = dma.done [#allocation11], 256
    $region45: #{tpu_custom_call.1} parent=1 // pred_fallthru
      _
    // Predicated region
    $region46: #{tpu_custom_call.1} parent=1 // pred_check
      _
    $region47: #{tpu_custom_call.1} parent=1 // pred_check_branch
      %116 = sbr.rel (0) target = $region49
    $region48: #{tpu_custom_call.1} parent=1 // pred_region
      %118 = dma.done [#allocation14], 256
    $region49: #{tpu_custom_call.1} parent=1 // pred_fallthru
      _
    %p119 = scmp.eq.s32.totalorder 0, 0
    %p120 = scmp.eq.s32.totalorder 0, 0
    %p121 = pnand %p119, %p120
    %p122 = pneg %p121
    // Predicated region
    $region50: #{tpu_custom_call.1} parent=1 // pred_check
      _
    $region51: #{tpu_custom_call.1} parent=1 // pred_check_branch
      %124 = sbr.rel (%p121) target = $region53
    $region52: #{tpu_custom_call.1} parent=1 // pred_region
      %vm125 = vcmask 1024
      %126 = vst.msk [vmem:[%s6] sm:$0x3] %vm125, 0.0
      %127 = vst.msk [vmem:[%s7] sm:$0x3] %vm125, 0.0
      %128 = vst.msk [vmem:[%s8] sm:$0x3] %vm125, 0.0
      %129 = vst.msk [vmem:[%s9] sm:$0x3] %vm125, 0.0
      %130 = vst.msk [vmem:[%s10] sm:$0x3] %vm125, 0.0
      %131 = vst.msk [vmem:[%s11] sm:$0x3] %vm125, 0.0
    $region53: #{tpu_custom_call.1} parent=1 // pred_fallthru
      _
    // Predicated region
    $region54: #{tpu_custom_call.1} parent=1 // pred_check
      %p132 = pneg %p120
    $region55: #{tpu_custom_call.1} parent=1 // pred_check_branch
      %134 = sbr.rel (%p132) target = $region57
    $region56: #{tpu_custom_call.1} parent=1 // pred_region
      %vm135 = vcmask 58368
      %136 = vst.msk [vmem:[#allocation2] sm:$0x3] %vm135, -inf
      %137 = vst.msk [vmem:[#allocation2 + $0x2] sm:$0x3] %vm135, -inf
      %138 = vst.msk [vmem:[#allocation2 + $0x4] sm:$0x3] %vm135, -inf
      %139 = vst.msk [vmem:[#allocation2 + $0x6] sm:$0x3] %vm135, -inf
      %140 = vst.msk [vmem:[#allocation3] sm:$0x3] %vm135, 0.0
      %141 = vst.msk [vmem:[#allocation3 + $0x2] sm:$0x3] %vm135, 0.0
      %142 = vst.msk [vmem:[#allocation3 + $0x4] sm:$0x3] %vm135, 0.0
      %143 = vst.msk [vmem:[#allocation3 + $0x6] sm:$0x3] %vm135, 0.0
      %144 = vst.msk [vmem:[#allocation4] sm:$0x3] %vm135, 0.0
      %145 = vst.msk [vmem:[#allocation4 + $0x2] sm:$0x3] %vm135, 0.0
      %146 = vst.msk [vmem:[#allocation4 + $0x4] sm:$0x3] %vm135, 0.0
      %147 = vst.msk [vmem:[#allocation4 + $0x6] sm:$0x3] %vm135, 0.0
    $region57: #{tpu_custom_call.1} parent=1 // pred_fallthru
      _
    %s148 = smul.u32 0, 32
    %v149 = vld [vmem:[#allocation5] sm:$0x3]
    %v150 = vstv %s148
    %v151 = vsub.s32 %v149, %v150
    %v152 = vlaneseq
    %v153 = vand.u32 %v152, 127
    %v154 = vperm.slane %v151, 0
    %v155 = vlaneseq
    %v156 = vshrl.u32 %v155, 7
    %158 = vset.pattern.permute.xlu0 %v156
    %159 = vperm.xlu0 %158, %v154
    %v160 = vpop.permute.xlu0 %159
    %v161 = vperm.slane %v151, 1
    %v162 = vlaneseq
    %v163 = vshrl.u32 %v162, 7
    %165 = vset.pattern.permute.xlu0 %v163
    %166 = vperm.xlu0 %165, %v161
    %v167 = vpop.permute.xlu0 %166
    %vm168 = vcmp.eq.s32.totalorder %v153, %v160
    %vm169 = vcmp.eq.s32.totalorder %v153, %v167
    %vm170 = vcmp.ne.s32.totalorder %v149, 4294967196
    %v171 = vsel %vm170, 1, 0
    %v172 = vcvt.s32.f32 %v171
    %v173 = vld [vmem:[#allocation7] sm:$0x3]
    %v174 = vsub.s32 %v173, %v150
    %v175 = vperm.slane %v174, 0
    %v176 = vlaneseq
    %v177 = vshrl.u32 %v176, 7
    %179 = vset.pattern.permute.xlu0 %v177
    %180 = vperm.xlu0 %179, %v175
    %v181 = vpop.permute.xlu0 %180
    %v182 = vperm.slane %v174, 1
    %v183 = vlaneseq
    %v184 = vshrl.u32 %v183, 7
    %186 = vset.pattern.permute.xlu0 %v184
    %187 = vperm.xlu0 %186, %v182
    %v188 = vpop.permute.xlu0 %187
    %vm189 = vcmp.eq.s32.totalorder %v153, %v181
    %vm190 = vcmp.eq.s32.totalorder %v153, %v188
    %vm191 = vcmp.ne.s32.totalorder %v173, 4294967196
    %v192 = vsel %vm191, 1, 0
    %v193 = vcvt.s32.f32 %v192
    %v194 = vld [vmem:[#allocation9] sm:$0xff]
    %v195 = vld [vmem:[#allocation9 + $0x8] sm:$0xff]
    %v196 = vld [vmem:[#allocation2] sm:$0x3]
    %vm197 = vcmask 261120
    %v198 = vsel %vm197, %v194, -inf
    %199 = vmax.xlane.f32.xlu0 %v198
    %v200 = vpop.xlane.xlu0 %199
    %v201 = vsel %vm197, %v195, -inf
    %202 = vmax.xlane.f32.xlu0 %v201
    %v203 = vpop.xlane.xlu0 %202
    %v206 = vperm.slane %v200, %v153
    %v207 = vperm.slane %v203, %v153
    %vm208 = vcmask 1041409
    %v209 = vsel %vm208, %v207, %v206
    %v211 = vmax.f32 %v196, %v209
    %v212 = vsub.f32 %v196, %v211
    %v213 = vmul.f32 %v212, 1.442695
    %v214 = vpow.pop %v213
    %v215 = vld [vmem:[#allocation3] sm:$0x3]
    %v216 = vmul.f32 %v215, %v214
    %v217 = vperm.slane %v211, 0
    %v218 = vlaneseq
    %v219 = vshrl.u32 %v218, 7
    %221 = vset.pattern.permute.xlu0 %v219
    %222 = vperm.xlu0 %221, %v217
    %v223 = vpop.permute.xlu0 %222
    %v224 = vperm.slane %v211, 1
    %v225 = vlaneseq
    %v226 = vshrl.u32 %v225, 7
    %228 = vset.pattern.permute.xlu0 %v226
    %229 = vperm.xlu0 %228, %v224
    %v230 = vpop.permute.xlu0 %229
    %v231 = vsub.f32 %v194, %v223
    %v232 = vsub.f32 %v195, %v230
    %v233 = vmul.f32 %v231, 1.442695
    %v234 = vpow.pop %v233
    %v235 = vmul.f32 %v232, 1.442695
    %v236 = vpow.pop %v235
    %v237 = vsel %vm197, %v234, 0.0
    %238 = vadd.xlane.f32.xlu0 %v237
    %v239 = vpop.xlane.xlu0 %238
    %v240 = vsel %vm197, %v236, 0.0
    %241 = vadd.xlane.f32.xlu0 %v240
    %v242 = vpop.xlane.xlu0 %241
    %v245 = vperm.slane %v239, %v153
    %v246 = vperm.slane %v242, %v153
    %v247 = vsel %vm208, %v246, %v245
    %v249 = vadd.f32 %v216, %v247
    %vm250 = vcmask 58368
    %251 = vst.msk [vmem:[#allocation3] sm:$0x3] %vm250, %v249
    %v252 = vld [vmem:[#allocation4] sm:$0x3]
    %v253 = vsel %vm168, %v194, 0.0
    %v254 = vsel %vm169, %v195, 0.0
    %v255 = vsel %vm197, %v253, 0.0
    %256 = vadd.xlane.f32.xlu0 %v255
    %v257 = vpop.xlane.xlu0 %256
    %v258 = vsel %vm197, %v254, 0.0
    %259 = vadd.xlane.f32.xlu0 %v258
    %v260 = vpop.xlane.xlu0 %259
    %v263 = vperm.slane %v257, %v153
    %v264 = vperm.slane %v260, %v153
    %v265 = vsel %vm208, %v264, %v263
    %v267 = vadd.f32 %v252, %v265
    %268 = vst.msk [vmem:[#allocation4] sm:$0x3] %vm250, %v267
    %269 = vst.msk [vmem:[#allocation2] sm:$0x3] %vm250, %v211
    %v270 = vld [vmem:[#allocation10] sm:$0xff]
    %v271 = vld [vmem:[#allocation10 + $0x8] sm:$0xff]
    %s272 = scalar_lea.vmem [#allocation2], 2
    %v273 = vld [vmem:[%s272] sm:$0x3]
    %v274 = vsel %vm197, %v270, -inf
    %275 = vmax.xlane.f32.xlu0 %v274
    %v276 = vpop.xlane.xlu0 %275
    %v277 = vsel %vm197, %v271, -inf
    %278 = vmax.xlane.f32.xlu0 %v277
    %v279 = vpop.xlane.xlu0 %278
    %v282 = vperm.slane %v276, %v153
    %v283 = vperm.slane %v279, %v153
    %v284 = vsel %vm208, %v283, %v282
    %v286 = vmax.f32 %v273, %v284
    %v287 = vsub.f32 %v273, %v286
    %v288 = vmul.f32 %v287, 1.442695
    %v289 = vpow.pop %v288
    %s290 = scalar_lea.vmem [#allocation3], 2
    %v291 = vld [vmem:[%s290] sm:$0x3]
    %v292 = vmul.f32 %v291, %v289
    %v293 = vperm.slane %v286, 0
    %v294 = vlaneseq
    %v295 = vshrl.u32 %v294, 7
    %297 = vset.pattern.permute.xlu0 %v295
    %298 = vperm.xlu0 %297, %v293
    %v299 = vpop.permute.xlu0 %298
    %v300 = vperm.slane %v286, 1
    %v301 = vlaneseq
    %v302 = vshrl.u32 %v301, 7
    %304 = vset.pattern.permute.xlu0 %v302
    %305 = vperm.xlu0 %304, %v300
    %v306 = vpop.permute.xlu0 %305
    %v307 = vsub.f32 %v270, %v299
    %v308 = vsub.f32 %v271, %v306
    %v309 = vmul.f32 %v307, 1.442695
    %v310 = vpow.pop %v309
    %v311 = vmul.f32 %v308, 1.442695
    %v312 = vpow.pop %v311
    %v313 = vsel %vm197, %v310, 0.0
    %314 = vadd.xlane.f32.xlu0 %v313
    %v315 = vpop.xlane.xlu0 %314
    %v316 = vsel %vm197, %v312, 0.0
    %317 = vadd.xlane.f32.xlu0 %v316
    %v318 = vpop.xlane.xlu0 %317
    %v321 = vperm.slane %v315, %v153
    %v322 = vperm.slane %v318, %v153
    %v323 = vsel %vm208, %v322, %v321
    %v325 = vadd.f32 %v292, %v323
    %326 = vst.msk [vmem:[%s290] sm:$0x3] %vm250, %v325
    %s327 = scalar_lea.vmem [#allocation4], 2
    %v328 = vld [vmem:[%s327] sm:$0x3]
    %v329 = vsel %vm189, %v270, 0.0
    %v330 = vsel %vm190, %v271, 0.0
    %v331 = vsel %vm197, %v329, 0.0
    %332 = vadd.xlane.f32.xlu0 %v331
    %v333 = vpop.xlane.xlu0 %332
    %v334 = vsel %vm197, %v330, 0.0
    %335 = vadd.xlane.f32.xlu0 %v334
    %v336 = vpop.xlane.xlu0 %335
    %v339 = vperm.slane %v333, %v153
    %v340 = vperm.slane %v336, %v153
    %v341 = vsel %vm208, %v340, %v339
    %v343 = vadd.f32 %v328, %v341
    %344 = vst.msk [vmem:[%s327] sm:$0x3] %vm250, %v343
    %345 = vst.msk [vmem:[%s272] sm:$0x3] %vm250, %v286
    %v346 = vld [vmem:[#allocation12] sm:$0xff]
    %v347 = vld [vmem:[#allocation12 + $0x8] sm:$0xff]
    %s348 = scalar_lea.vmem [#allocation2], 4
    %v349 = vld [vmem:[%s348] sm:$0x3]
    %v350 = vsel %vm197, %v346, -inf
    %351 = vmax.xlane.f32.xlu0 %v350
    %v352 = vpop.xlane.xlu0 %351
    %v353 = vsel %vm197, %v347, -inf
    %354 = vmax.xlane.f32.xlu0 %v353
    %v355 = vpop.xlane.xlu0 %354
    %v358 = vperm.slane %v352, %v153
    %v359 = vperm.slane %v355, %v153
    %v360 = vsel %vm208, %v359, %v358
    %v362 = vmax.f32 %v349, %v360
    %v363 = vsub.f32 %v349, %v362
    %v364 = vmul.f32 %v363, 1.442695
    %v365 = vpow.pop %v364
    %s366 = scalar_lea.vmem [#allocation3], 4
    %v367 = vld [vmem:[%s366] sm:$0x3]
    %v368 = vmul.f32 %v367, %v365
    %v369 = vperm.slane %v362, 0
    %v370 = vlaneseq
    %v371 = vshrl.u32 %v370, 7
    %373 = vset.pattern.permute.xlu0 %v371
    %374 = vperm.xlu0 %373, %v369
    %v375 = vpop.permute.xlu0 %374
    %v376 = vperm.slane %v362, 1
    %v377 = vlaneseq
    %v378 = vshrl.u32 %v377, 7
    %380 = vset.pattern.permute.xlu0 %v378
    %381 = vperm.xlu0 %380, %v376
    %v382 = vpop.permute.xlu0 %381
    %v383 = vsub.f32 %v346, %v375
    %v384 = vsub.f32 %v347, %v382
    %v385 = vmul.f32 %v383, 1.442695
    %v386 = vpow.pop %v385
    %v387 = vmul.f32 %v384, 1.442695
    %v388 = vpow.pop %v387
    %v389 = vsel %vm197, %v386, 0.0
    %390 = vadd.xlane.f32.xlu0 %v389
    %v391 = vpop.xlane.xlu0 %390
    %v392 = vsel %vm197, %v388, 0.0
    %393 = vadd.xlane.f32.xlu0 %v392
    %v394 = vpop.xlane.xlu0 %393
    %v397 = vperm.slane %v391, %v153
    %v398 = vperm.slane %v394, %v153
    %v399 = vsel %vm208, %v398, %v397
    %v401 = vadd.f32 %v368, %v399
    %402 = vst.msk [vmem:[%s366] sm:$0x3] %vm250, %v401
    %s403 = scalar_lea.vmem [#allocation4], 4
    %v404 = vld [vmem:[%s403] sm:$0x3]
    %v405 = vsel %vm168, %v346, 0.0
    %v406 = vsel %vm169, %v347, 0.0
    %v407 = vsel %vm197, %v405, 0.0
    %408 = vadd.xlane.f32.xlu0 %v407
    %v409 = vpop.xlane.xlu0 %408
    %v410 = vsel %vm197, %v406, 0.0
    %411 = vadd.xlane.f32.xlu0 %v410
    %v412 = vpop.xlane.xlu0 %411
    %v415 = vperm.slane %v409, %v153
    %v416 = vperm.slane %v412, %v153
    %v417 = vsel %vm208, %v416, %v415
    %v419 = vadd.f32 %v404, %v417
    %420 = vst.msk [vmem:[%s403] sm:$0x3] %vm250, %v419
    %421 = vst.msk [vmem:[%s348] sm:$0x3] %vm250, %v362
    %v422 = vld [vmem:[#allocation13] sm:$0xff]
    %v423 = vld [vmem:[#allocation13 + $0x8] sm:$0xff]
    %s424 = scalar_lea.vmem [#allocation2], 6
    %v425 = vld [vmem:[%s424] sm:$0x3]
    %v426 = vsel %vm197, %v422, -inf
    %427 = vmax.xlane.f32.xlu0 %v426
    %v428 = vpop.xlane.xlu0 %427
    %v429 = vsel %vm197, %v423, -inf
    %430 = vmax.xlane.f32.xlu0 %v429
    %v431 = vpop.xlane.xlu0 %430
    %v434 = vperm.slane %v428, %v153
    %v435 = vperm.slane %v431, %v153
    %v436 = vsel %vm208, %v435, %v434
    %v438 = vmax.f32 %v425, %v436
    %v439 = vsub.f32 %v425, %v438
    %v440 = vmul.f32 %v439, 1.442695
    %v441 = vpow.pop %v440
    %s442 = scalar_lea.vmem [#allocation3], 6
    %v443 = vld [vmem:[%s442] sm:$0x3]
    %v444 = vmul.f32 %v443, %v441
    %v445 = vperm.slane %v438, 0
    %v446 = vlaneseq
    %v447 = vshrl.u32 %v446, 7
    %449 = vset.pattern.permute.xlu0 %v447
    %450 = vperm.xlu0 %449, %v445
    %v451 = vpop.permute.xlu0 %450
    %v452 = vperm.slane %v438, 1
    %v453 = vlaneseq
    %v454 = vshrl.u32 %v453, 7
    %456 = vset.pattern.permute.xlu0 %v454
    %457 = vperm.xlu0 %456, %v452
    %v458 = vpop.permute.xlu0 %457
    %v459 = vsub.f32 %v422, %v451
    %v460 = vsub.f32 %v423, %v458
    %v461 = vmul.f32 %v459, 1.442695
    %v462 = vpow.pop %v461
    %v463 = vmul.f32 %v460, 1.442695
    %v464 = vpow.pop %v463
    %v465 = vsel %vm197, %v462, 0.0
    %466 = vadd.xlane.f32.xlu0 %v465
    %v467 = vpop.xlane.xlu0 %466
    %v468 = vsel %vm197, %v464, 0.0
    %469 = vadd.xlane.f32.xlu0 %v468
    %v470 = vpop.xlane.xlu0 %469
    %v473 = vperm.slane %v467, %v153
    %v474 = vperm.slane %v470, %v153
    %v475 = vsel %vm208, %v474, %v473
    %v477 = vadd.f32 %v444, %v475
    %478 = vst.msk [vmem:[%s442] sm:$0x3] %vm250, %v477
    %s479 = scalar_lea.vmem [#allocation4], 6
    %v480 = vld [vmem:[%s479] sm:$0x3]
    %v481 = vsel %vm189, %v422, 0.0
    %v482 = vsel %vm190, %v423, 0.0
    %v483 = vsel %vm197, %v481, 0.0
    %484 = vadd.xlane.f32.xlu0 %v483
    %v485 = vpop.xlane.xlu0 %484
    %v486 = vsel %vm197, %v482, 0.0
    %487 = vadd.xlane.f32.xlu0 %v486
    %v488 = vpop.xlane.xlu0 %487
    %v491 = vperm.slane %v485, %v153
    %v492 = vperm.slane %v488, %v153
    %v493 = vsel %vm208, %v492, %v491
    %v495 = vadd.f32 %v480, %v493
    %496 = vst.msk [vmem:[%s479] sm:$0x3] %vm250, %v495
    %497 = vst.msk [vmem:[%s424] sm:$0x3] %vm250, %v438
    // Predicated region
    $region58: #{tpu_custom_call.1} parent=1 // pred_check
      %p498 = pneg %p120
    $region59: #{tpu_custom_call.1} parent=1 // pred_check_branch
      %500 = sbr.rel (%p498) target = $region61
    $region60: #{tpu_custom_call.1} parent=1 // pred_region
      %v501 = vld [vmem:[#allocation2] sm:$0x3]
      %v502 = vld [vmem:[#allocation3] sm:$0x3]
      %v503 = vlog2.pop %v502
      %v504 = vmul.f32 %v503, 0.6931472
      %v505 = vadd.f32 %v501, %v504
      %v506 = vld [vmem:[#allocation4] sm:$0x3]
      %v507 = vsub.f32 %v506, %v505
      %v508 = vld [vmem:[%s6] sm:$0x3]
      %v509 = vmul.f32 %v507, %v172
      %v510 = vsel %vm250, %v509, 0.0
      %511 = vadd.xlane.f32.xlu0 %v510
      %v512 = vpop.xlane.xlu0 %511
      %v513 = vadd.f32 %v508, %v512
      %vm514 = vcmask 1024
      %515 = vst.msk [vmem:[%s6] sm:$0x3] %vm514, %v513
      %v516 = vld [vmem:[%s272] sm:$0x3]
      %v517 = vld [vmem:[%s290] sm:$0x3]
      %v518 = vlog2.pop %v517
      %v519 = vmul.f32 %v518, 0.6931472
      %v520 = vadd.f32 %v516, %v519
      %v521 = vld [vmem:[%s327] sm:$0x3]
      %v522 = vsub.f32 %v521, %v520
      %v523 = vld [vmem:[%s7] sm:$0x3]
      %v524 = vmul.f32 %v522, %v193
      %v525 = vsel %vm250, %v524, 0.0
      %526 = vadd.xlane.f32.xlu0 %v525
      %v527 = vpop.xlane.xlu0 %526
      %v528 = vadd.f32 %v523, %v527
      %529 = vst.msk [vmem:[%s7] sm:$0x3] %vm514, %v528
      %v530 = vld [vmem:[%s348] sm:$0x3]
      %v531 = vld [vmem:[%s366] sm:$0x3]
      %v532 = vlog2.pop %v531
      %v533 = vmul.f32 %v532, 0.6931472
      %v534 = vadd.f32 %v530, %v533
      %v535 = vld [vmem:[%s403] sm:$0x3]
      %v536 = vsub.f32 %v535, %v534
      %v537 = vld [vmem:[%s8] sm:$0x3]
      %v538 = vmul.f32 %v536, %v172
      %v539 = vsel %vm250, %v538, 0.0
      %540 = vadd.xlane.f32.xlu0 %v539
      %v541 = vpop.xlane.xlu0 %540
      %v542 = vadd.f32 %v537, %v541
      %543 = vst.msk [vmem:[%s8] sm:$0x3] %vm514, %v542
      %v544 = vld [vmem:[%s424] sm:$0x3]
      %v545 = vld [vmem:[%s442] sm:$0x3]
      %v546 = vlog2.pop %v545
      %v547 = vmul.f32 %v546, 0.6931472
      %v548 = vadd.f32 %v544, %v547
      %v549 = vld [vmem:[%s479] sm:$0x3]
      %v550 = vsub.f32 %v549, %v548
      %v551 = vld [vmem:[%s9] sm:$0x3]
      %v552 = vmul.f32 %v550, %v193
      %v553 = vsel %vm250, %v552, 0.0
      %554 = vadd.xlane.f32.xlu0 %v553
      %v555 = vpop.xlane.xlu0 %554
      %v556 = vadd.f32 %v551, %v555
      %557 = vst.msk [vmem:[%s9] sm:$0x3] %vm514, %v556
      %v558 = vld [vmem:[%s10] sm:$0x3]
      %v559 = vsel %vm250, %v172, 0.0
      %560 = vadd.xlane.f32.xlu0 %v559
      %v561 = vpop.xlane.xlu0 %560
      %v562 = vadd.f32 %v558, %v561
      %563 = vst.msk [vmem:[%s10] sm:$0x3] %vm514, %v562
      %v564 = vld [vmem:[%s11] sm:$0x3]
      %v565 = vsel %vm250, %v193, 0.0
      %566 = vadd.xlane.f32.xlu0 %v565
      %v567 = vpop.xlane.xlu0 %566
      %v568 = vadd.f32 %v564, %v567
      %569 = vst.msk [vmem:[%s11] sm:$0x3] %vm514, %v568
    $region61: #{tpu_custom_call.1} parent=1 // pred_fallthru
      _
    // Predicated region
    $region62: #{tpu_custom_call.1} parent=1 // pred_check
      _
    $region63: #{tpu_custom_call.1} parent=1 // pred_check_branch
      %571 = sbr.rel (0) target = $region65
    $region64: #{tpu_custom_call.1} parent=1 // pred_region
      _
    $region65: #{tpu_custom_call.1} parent=1 // pred_fallthru
      _
    // Predicated region
    $region66: #{tpu_custom_call.1} parent=1 // pred_check
      _
    $region67: #{tpu_custom_call.1} parent=1 // pred_check_branch
      %573 = sbr.rel (0) target = $region69
    $region68: #{tpu_custom_call.1} parent=1 // pred_region
      _
    $region69: #{tpu_custom_call.1} parent=1 // pred_fallthru
      _
    // Predicated region
    $region70: #{tpu_custom_call.1} parent=1 // pred_check
      _
    $region71: #{tpu_custom_call.1} parent=1 // pred_check_branch
      %575 = sbr.rel (0) target = $region73
    $region72: #{tpu_custom_call.1} parent=1 // pred_region
      _
    $region73: #{tpu_custom_call.1} parent=1 // pred_fallthru
      _
    // Predicated region
    $region74: #{tpu_custom_call.1} parent=1 // pred_check
      _
    $region75: #{tpu_custom_call.1} parent=1 // pred_check_branch
      %577 = sbr.rel (0) target = $region77
    $region76: #{tpu_custom_call.1} parent=1 // pred_region
      _
    $region77: #{tpu_custom_call.1} parent=1 // pred_fallthru
      _
    // Predicated region
    $region78: #{tpu_custom_call.1} parent=1 // pred_check
      _
    $region79: #{tpu_custom_call.1} parent=1 // pred_check_branch
      %579 = sbr.rel (0) target = $region81
    $region80: #{tpu_custom_call.1} parent=1 // pred_region
      _
    $region81: #{tpu_custom_call.1} parent=1 // pred_fallthru
      _
    // Predicated region
    $region82: #{tpu_custom_call.1} parent=1 // pred_check
      _
    $region83: #{tpu_custom_call.1} parent=1 // pred_check_branch
      %581 = sbr.rel (0) target = $region85
    $region84: #{tpu_custom_call.1} parent=1 // pred_region
      _
    $region85: #{tpu_custom_call.1} parent=1 // pred_fallthru
      _
    // Predicated region
    $region86: #{tpu_custom_call.1} parent=1 // pred_check
      _
    $region87: #{tpu_custom_call.1} parent=1 // pred_check_branch
      %583 = sbr.rel (0) target = $region89
    $region88: #{tpu_custom_call.1} parent=1 // pred_region
      _
    $region89: #{tpu_custom_call.1} parent=1 // pred_fallthru
      _
    // Predicated region
    $region90: #{tpu_custom_call.1} parent=1 // pred_check
      _
    $region91: #{tpu_custom_call.1} parent=1 // pred_check_branch
      %585 = sbr.rel (0) target = $region93
    $region92: #{tpu_custom_call.1} parent=1 // pred_region
      _
    $region93: #{tpu_custom_call.1} parent=1 // pred_fallthru
      _
    // Predicated region
    $region94: #{tpu_custom_call.1} parent=1 // pred_check
      _
    $region95: #{tpu_custom_call.1} parent=1 // pred_check_branch
      %587 = sbr.rel (0) target = $region97
    $region96: #{tpu_custom_call.1} parent=1 // pred_region
      _
    $region97: #{tpu_custom_call.1} parent=1 // pred_fallthru
      _
    // Predicated region
    $region98: #{tpu_custom_call.1} parent=1 // pred_check
      _
    $region99: #{tpu_custom_call.1} parent=1 // pred_check_branch
      %589 = sbr.rel (0) target = $region101
    $region100: #{tpu_custom_call.1} parent=1 // pred_region
      _
    $region101: #{tpu_custom_call.1} parent=1 // pred_fallthru
      _
    // Predicated region
    $region102: #{tpu_custom_call.1} parent=1 // pred_check
      _
    $region103: #{tpu_custom_call.1} parent=1 // pred_check_branch
      %591 = sbr.rel (0) target = $region105
    $region104: #{tpu_custom_call.1} parent=1 // pred_region
      _
    $region105: #{tpu_custom_call.1} parent=1 // pred_fallthru
      _
    // Predicated region
    $region106: #{tpu_custom_call.1} parent=1 // pred_check
      _
    $region107: #{tpu_custom_call.1} parent=1 // pred_check_branch
      %593 = sbr.rel (0) target = $region109
    $region108: #{tpu_custom_call.1} parent=1 // pred_region
      _
    $region109: #{tpu_custom_call.1} parent=1 // pred_fallthru
      _
    %594 = vsyncpa [#allocation6], 1
    %595 = vsyncpa [#allocation8], 1
    %596 = vsyncpa [#allocation11], 1
    %597 = vsyncpa [#allocation14], 1

</llo_original>
